<compile_context>
chip_gen: v6e
topology: v6e:2x2x1
jax: 0.10.0
libtpu: 0.0.40
codegen_flags: <defaults>
</compile_context>

<pallas_src>
import functools

import numpy as np
import jax
import jax.numpy as jnp
from jax.experimental import pallas as pl
from jax.experimental.pallas import tpu as pltpu


# ----------------------------------------------------------------------------
# Deterministic "parameters": biorthogonal filter banks (built in-script).
# ----------------------------------------------------------------------------
_S2 = np.sqrt(2.0)

FILTER_BANKS = {
    "bior1.1": dict(
        dec_lo=np.array([1.0, 1.0]) / _S2,
        dec_hi=np.array([1.0, -1.0]) / _S2,
        rec_lo=np.array([1.0, 1.0]) / _S2,
        rec_hi=np.array([1.0, -1.0]) / _S2,
    ),
    "bior2.2": dict(
        dec_lo=np.array([-1.0, 2.0, 6.0, 2.0, -1.0]) / 8.0 * _S2,
        dec_hi=np.array([1.0, -2.0, 1.0]) / 4.0 * _S2,
        rec_lo=np.array([1.0, 2.0, 1.0]) / 4.0 * _S2,
        rec_hi=np.array([-1.0, -2.0, 6.0, -2.0, -1.0]) / 8.0 * _S2,
    ),
    "bior3.3": dict(
        dec_lo=np.array([3.0, -9.0, -7.0, 45.0, 45.0, -7.0, -9.0, 3.0]) / 64.0 * _S2,
        dec_hi=np.array([1.0, -3.0, 3.0, -1.0]) / 8.0 * _S2,
        rec_lo=np.array([1.0, 3.0, 3.0, 1.0]) / 8.0 * _S2,
        rec_hi=np.array([3.0, 9.0, -7.0, -45.0, 45.0, 7.0, -9.0, -3.0]) / 64.0 * _S2,
    ),
}
WAVELETS = ("bior1.1", "bior2.2", "bior3.3")
E5 = float(np.exp(5.0))
E9 = float(np.exp(9.0))

# Operands (input + constant-folded operators) are shipped to the kernel in bf16:
# the kernel is HBM/launch bound, so halving DMA bytes is the highest-value change.
# All matmuls accumulate in f32 (preferred_element_type) and intermediates stay f32.
OPERAND_DTYPE = jnp.bfloat16
REL_TOL = 3e-2 if OPERAND_DTYPE == jnp.bfloat16 else 1e-3   # bf16 operand quantization ~1%


def _analysis_matrix(filt, L):
    """Right-multiply form: y = x @ M, M (L, L//2). Periodized decimate-by-2."""
    M = np.zeros((L, L // 2), np.float64)
    for j in range(L // 2):
        for k, f in enumerate(filt):
            M[(2 * j + k) % L, j] += f
    return M


def _synthesis_matrix(filt, L):
    """Right-multiply form: x = y @ M, M (L//2, L). Periodized upsample-by-2."""
    M = np.zeros((L // 2, L), np.float64)
    for j in range(L // 2):
        for k, f in enumerate(filt):
            M[j, (2 * j + k) % L] += f
    return M


def _per_axis_bank(name, L):
    fb = FILTER_BANKS[name]
    return (_analysis_matrix(fb["dec_lo"], L), _analysis_matrix(fb["dec_hi"], L),
            _synthesis_matrix(fb["rec_lo"], L), _synthesis_matrix(fb["rec_hi"], L))


def build_operators(n_pos, n_vel, dtype=OPERAND_DTYPE):
    """Constant-fold the per-wavelet DWT/IDWT pipelines into flat operator matrices.

    x is viewed as x2d[(a,b), (h,w)] of shape (P^2, V^2) (row-major flattening).
    Per wavelet the LL branch is   Mpos_w @ (x2d @ Wa_w) @ Ws_w ; the level-1 detail
    branch only touches the (vel,vel) pair, so it is pre-summed over the wavelets
    into one matrix Bdet.  The per-wavelet band matrices Wa_w / Ws_w are zero-padded
    from V^2/4 (=64) to 128 lanes and concatenated so the kernel can run ONE batched
    analysis matmul and ONE batched synthesis matmul with vreg-aligned slices.
    """
    PP, VV = n_pos * n_pos, n_vel * n_vel
    half = VV // 4
    band = int(np.ceil(half / 128.0)) * 128          # lane-padded per-wavelet band width

    wa_blocks, ws_blocks, mpos_list = [], [], []
    bdet = np.zeros((VV, VV), np.float64)
    for name in WAVELETS:
        Av_lo, Av_hi, Sv_lo, Sv_hi = _per_axis_bank(name, n_vel)
        Ap_lo, Ap_hi, Sp_lo, Sp_hi = _per_axis_bank(name, n_pos)

        # level-1 LL analysis / synthesis over the flattened (vel, vel) column pair,
        # zero-padded to `band` columns / rows (padding contributes exactly zero).
        wa_w = np.zeros((VV, band), np.float64)
        wa_w[:, :half] = np.kron(Av_lo, Av_lo)
        wa_blocks.append(wa_w)

        ws_w = np.zeros((band, VV), np.float64)
        ws_w[:half, :] = np.kron(Sv_lo, Sv_lo)
        ws_blocks.append(ws_w)

        # level-2 forward + exp(5)/exp(9) band scaling + inverse, collapsed over the
        # flattened (pos, pos) row pair (this also absorbs both permute(2,3,0,1)s).
        Tlo = (Ap_lo @ Sp_lo).T
        Thi = (Ap_hi @ Sp_hi).T
        mpos_list.append(E5 * np.kron(Tlo, Tlo)
                         + E9 * (np.kron(Tlo, Thi) + np.kron(Thi, Tlo) + np.kron(Thi, Thi)))

        # level-1 detail branch (LH/HL/HH analysed, * exp(9), synthesised), pre-summed.
        Ulo = Av_lo @ Sv_lo
        Uhi = Av_hi @ Sv_hi
        bdet += E9 * (np.kron(Ulo, Uhi) + np.kron(Uhi, Ulo) + np.kron(Uhi, Uhi))

    cast = lambda a: jnp.asarray(np.asarray(a), dtype=dtype)
    return (cast(np.concatenate(wa_blocks, axis=1)),   # Wa_cat   (V^2, nw*band)
            cast(np.stack(mpos_list)),                 # Mpos     (nw, P^2, P^2)
            cast(np.concatenate(ws_blocks, axis=0)),   # Ws_stack (nw*band, V^2)
            cast(bdet))                                # Bdet     (V^2, V^2)


def _tensorcores_per_chip():
    """How many TensorCores one Pallas call can span via 'parallel' grid semantics.

    v5e / v6e expose a single TensorCore per chip, so a 2-step grid would just be a
    serial loop that duplicates the LL-analysis matmul; v7x (and megacore v4/v5p)
    expose 2, where splitting the output rows across the grid pays off.
    """
    try:
        dev = jax.devices()[0]
        if dev.platform != "tpu":
            return 1
        kind = dev.device_kind.lower()
    except Exception:
        return 1
    if "lite" in kind or "v5e" in kind or "v6e" in kind:
        return 1
    if "v7" in kind or "v4" in kind or "v5p" in kind:
        return 2
    return 1


# ----------------------------------------------------------------------------
# Fused Pallas kernel: whole WaveNet forward, one call.
# ----------------------------------------------------------------------------
def _wavenet_kernel(x_ref, wa_ref, mpos_ref, ws_ref, bdet_ref, out_ref,
                    *, num_wavelets, band):
    """One grid step computes `blk` rows of the (P^2, V^2) output for all wavelets."""
    blk = out_ref.shape[0]
    x_all = x_ref[...]                                  # (P^2, V^2): whole input (bf16)
    if blk == x_ref.shape[0]:
        x_rows = x_all                                  # single-block grid (1-TC chips)
    else:
        row0 = pl.multiple_of(pl.program_id(0) * blk, blk)
        x_rows = x_ref[pl.ds(row0, blk), :]             # rows owned by this grid step

    # Shared level-1 detail branch of all three wavelets: one lane-dense bf16 matmul.
    acc = jnp.dot(x_rows, bdet_ref[...], preferred_element_type=jnp.float32)

    # Batched level-1 LL analysis for ALL wavelets at once (N = nw*band, 128-padded).
    ll1 = jnp.dot(x_all, wa_ref[...], preferred_element_type=jnp.float32)   # (P^2, nw*band) f32

    # Per-wavelet collapsed level-2 pipeline (the row-mixing operator differs per
    # wavelet); slices are at 128-lane-aligned offsets, so no relayout is needed.
    r1 = []
    for w in range(num_wavelets):                       # static unroll (3 iterations)
        mpos_w = mpos_ref[w].astype(jnp.float32)        # keep f32 intermediates exact-ish
        r1.append(jnp.dot(mpos_w, ll1[:, w * band:(w + 1) * band],
                          preferred_element_type=jnp.float32))              # (blk, band)
    r1cat = jnp.concatenate(r1, axis=-1)                # (blk, nw*band)

    # Batched level-1 LL synthesis: one matmul with K = nw*band, then accumulate.
    acc = acc + jnp.dot(r1cat, ws_ref[...].astype(jnp.float32),
                        preferred_element_type=jnp.float32)

    out_ref[...] = acc.astype(out_ref.dtype)


def wavenet_forward(x, n_pos, n_vel, operators):
    wa, mpos, ws, bdet = operators
    assert x.shape == (n_pos, n_pos, n_vel, n_vel)
    PP, VV = n_pos * n_pos, n_vel * n_vel
    nw = mpos.shape[0]
    band = wa.shape[1] // nw

    x2d = x.reshape(PP, VV).astype(OPERAND_DTYPE)       # contiguous -> free reshape

    # Generation-aware row blocking: 1 block on single-TC chips (v5e/v6e), 2 on v7x.
    nblk = _tensorcores_per_chip()
    if PP % nblk != 0 or (PP // nblk) % 8 != 0:
        nblk = 1
    blk = PP // nblk

    itemsize = lambda a: int(np.dtype(a.dtype).itemsize)
    flops = 2 * (nblk * PP * VV * (nw * band)           # batched LL analysis (per core)
                 + nw * PP * PP * band                   # collapsed level-2 pipelines
                 + PP * (nw * band) * VV                 # batched LL synthesis
                 + PP * VV * VV)                         # pre-summed detail branch
    bytes_accessed = (x2d.size * itemsize(x2d) + wa.size * itemsize(wa)
                      + mpos.size * itemsize(mpos) + ws.size * itemsize(ws)
                      + bdet.size * itemsize(bdet) + PP * VV * 4)

    out2d = pl.pallas_call(
        functools.partial(_wavenet_kernel, num_wavelets=nw, band=band),
        grid=(nblk,),
        in_specs=[
            pl.BlockSpec((PP, VV), lambda i: (0, 0)),              # x: whole, fetched once
            pl.BlockSpec((VV, nw * band), lambda i: (0, 0)),       # Wa_cat (all wavelets)
            pl.BlockSpec((nw, blk, PP), lambda i: (0, i, 0)),      # Mpos: this step's rows
            pl.BlockSpec((nw * band, VV), lambda i: (0, 0)),       # Ws_stack
            pl.BlockSpec((VV, VV), lambda i: (0, 0)),              # Bdet (pre-summed)
        ],
        out_specs=pl.BlockSpec((blk, VV), lambda i: (i, 0)),
        out_shape=jax.ShapeDtypeStruct((PP, VV), jnp.float32),
        compiler_params=pltpu.CompilerParams(dimension_semantics=("parallel",)),
        cost_estimate=pl.CostEstimate(flops=int(flops), transcendentals=0,
                                      bytes_accessed=int(bytes_accessed)),
    )(x2d, wa, mpos, ws, bdet)

    return out2d.reshape(n_pos, n_pos, n_vel, n_vel)


# ----------------------------------------------------------------------------
# Step-by-step pure-JAX (f32) reference of the same (substituted) wavelet semantics.
# ----------------------------------------------------------------------------
def wavenet_reference(x, n_pos, n_vel):
    ein = functools.partial(jnp.einsum, precision=jax.lax.Precision.HIGHEST)
    out = jnp.zeros_like(x)
    for name in WAVELETS:
        Av_lo, Av_hi, Sv_lo, Sv_hi = [jnp.asarray(m, jnp.float32)
                                      for m in _per_axis_bank(name, n_vel)]
        Ap_lo, Ap_hi, Sp_lo, Sp_hi = [jnp.asarray(m, jnp.float32)
                                      for m in _per_axis_bank(name, n_pos)]
        # level-1 forward over (vel, vel)
        ll1 = ein('abhw,hi,wj->abij', x, Av_lo, Av_lo)
        lh1 = ein('abhw,hi,wj->abij', x, Av_lo, Av_hi)
        hl1 = ein('abhw,hi,wj->abij', x, Av_hi, Av_lo)
        hh1 = ein('abhw,hi,wj->abij', x, Av_hi, Av_hi)
        # permute(2,3,0,1) + level-2 forward over (pos, pos)
        ll2 = ein('abij,ak,bl->ijkl', ll1, Ap_lo, Ap_lo)
        lh2 = ein('abij,ak,bl->ijkl', ll1, Ap_lo, Ap_hi)
        hl2 = ein('abij,ak,bl->ijkl', ll1, Ap_hi, Ap_lo)
        hh2 = ein('abij,ak,bl->ijkl', ll1, Ap_hi, Ap_hi)
        # level-2 inverse (LL * exp(5), details * exp(9)) + permute back
        r1 = (E5 * ein('ijkl,ka,lb->abij', ll2, Sp_lo, Sp_lo)
              + E9 * ein('ijkl,ka,lb->abij', lh2, Sp_lo, Sp_hi)
              + E9 * ein('ijkl,ka,lb->abij', hl2, Sp_hi, Sp_lo)
              + E9 * ein('ijkl,ka,lb->abij', hh2, Sp_hi, Sp_hi))
        # level-1 inverse (details * exp(9))
        out = out + (ein('abij,ih,jw->abhw', r1, Sv_lo, Sv_lo)
                     + E9 * ein('abij,ih,jw->abhw', lh1, Sv_lo, Sv_hi)
                     + E9 * ein('abij,ih,jw->abhw', hl1, Sv_hi, Sv_lo)
                     + E9 * ein('abij,ih,jw->abhw', hh1, Sv_hi, Sv_hi))
    return out


# ----------------------------------------------------------------------------
# Demo.
# ----------------------------------------------------------------------------
if __name__ == "__main__":
    N_POS, N_VEL = 16, 16                      # small, lane-friendly (P^2 = V^2 = 256)
    operators = build_operators(N_POS, N_VEL, dtype=OPERAND_DTYPE)

    key = jax.random.PRNGKey(0)
    x = jax.random.normal(key, (N_POS, N_POS, N_VEL, N_VEL), dtype=jnp.float32)

    fwd = jax.jit(lambda xx, ops: wavenet_forward(xx, N_POS, N_VEL, ops))
    out = jax.block_until_ready(fwd(x, operators))

    assert out.shape == (N_POS, N_POS, N_VEL, N_VEL)
    assert out.dtype == jnp.float32
    assert bool(jnp.all(jnp.isfinite(out)))

    # Validate the fused Pallas kernel against the step-by-step f32 JAX reference.
    # Tolerance accounts for bf16 quantization of the constant-folded operators
    # (float64 host-side build -> bf16 operands, f32 accumulation in-kernel).
    ref = jax.block_until_ready(
        jax.jit(lambda xx: wavenet_reference(xx, N_POS, N_VEL))(x))
    err = float(jnp.max(jnp.abs(out - ref)))
    scale = float(jnp.max(jnp.abs(ref))) + 1e-30
    assert err <= REL_TOL * scale, (err, scale)

    print("KERNEL_OK")
</pallas_src>

<mosaic_0001>
module attributes {stable_mosaic.version = 11 : i64} {
  func.func @_wavenet_kernel(%arg0: i32, %arg1: memref<256x256xbf16, #tpu.memory_space<vmem>>, %arg2: memref<256x384xbf16, #tpu.memory_space<vmem>>, %arg3: memref<3x256x256xbf16, #tpu.memory_space<vmem>>, %arg4: memref<384x256xbf16, #tpu.memory_space<vmem>>, %arg5: memref<256x256xbf16, #tpu.memory_space<vmem>>, %arg6: memref<256x256xf32, #tpu.memory_space<vmem>>) attributes {dimension_semantics = [#tpu.dimension_semantics<parallel>], iteration_bounds = array<i64: 1>, scalar_prefetch = 0 : i64, scratch_operands = 0 : i64, tpu.core_type = #tpu.core_type<tc>, window_params = [{pipeline_mode = #tpu.pipeline_mode<synchronous>, transform_indices = @transform_0, window_bounds = array<i64: 256, 256>}, {pipeline_mode = #tpu.pipeline_mode<synchronous>, transform_indices = @transform_1, window_bounds = array<i64: 256, 384>}, {transform_indices = @transform_2, window_bounds = array<i64: 3, 256, 256>}, {pipeline_mode = #tpu.pipeline_mode<synchronous>, transform_indices = @transform_3, window_bounds = array<i64: 384, 256>}, {pipeline_mode = #tpu.pipeline_mode<synchronous>, transform_indices = @transform_4, window_bounds = array<i64: 256, 256>}, {transform_indices = @transform_5, window_bounds = array<i64: 256, 256>}]} {
    %c0 = arith.constant 0 : index
    %c0_0 = arith.constant 0 : index
    %0 = vector.load %arg1[%c0, %c0_0] : memref<256x256xbf16, #tpu.memory_space<vmem>>, vector<256x256xbf16>
    %c0_1 = arith.constant 0 : index
    %c0_2 = arith.constant 0 : index
    %1 = vector.load %arg5[%c0_1, %c0_2] : memref<256x256xbf16, #tpu.memory_space<vmem>>, vector<256x256xbf16>
    %cst = arith.constant dense<0.000000e+00> : vector<256x256xf32>
    %2 = tpu.matmul %0, %1, %cst {dimension_numbers = #tpu.dot_dimension_numbers<[1], [0], [0], [1], [0, 0, 1, 1], [], []>} : vector<256x256xbf16>, vector<256x256xbf16>, vector<256x256xf32> -> vector<256x256xf32>
    %c0_3 = arith.constant 0 : index
    %c0_4 = arith.constant 0 : index
    %3 = vector.load %arg2[%c0_3, %c0_4] : memref<256x384xbf16, #tpu.memory_space<vmem>>, vector<256x384xbf16>
    %cst_5 = arith.constant dense<0.000000e+00> : vector<256x384xf32>
    %4 = tpu.matmul %0, %3, %cst_5 {dimension_numbers = #tpu.dot_dimension_numbers<[1], [0], [0], [1], [0, 0, 1, 1], [], []>} : vector<256x256xbf16>, vector<256x384xbf16>, vector<256x384xf32> -> vector<256x384xf32>
    %c0_6 = arith.constant 0 : index
    %c0_7 = arith.constant 0 : index
    %c0_8 = arith.constant 0 : index
    %5 = vector.load %arg3[%c0_6, %c0_7, %c0_8] : memref<3x256x256xbf16, #tpu.memory_space<vmem>>, vector<1x256x256xbf16>
    %6 = vector.shape_cast %5 : vector<1x256x256xbf16> to vector<256x256xbf16>
    %7 = arith.extf %6 : vector<256x256xbf16> to vector<256x256xf32>
    %8 = vector.extract_strided_slice %4 {offsets = [0, 0], sizes = [256, 128], strides = [1, 1]} : vector<256x384xf32> to vector<256x128xf32>
    %cst_9 = arith.constant dense<0.000000e+00> : vector<256x128xf32>
    %9 = tpu.matmul %7, %8, %cst_9 {dimension_numbers = #tpu.dot_dimension_numbers<[1], [0], [0], [1], [0, 0, 1, 1], [], []>} : vector<256x256xf32>, vector<256x128xf32>, vector<256x128xf32> -> vector<256x128xf32>
    %c1 = arith.constant 1 : index
    %c0_10 = arith.constant 0 : index
    %c0_11 = arith.constant 0 : index
    %10 = vector.load %arg3[%c1, %c0_10, %c0_11] : memref<3x256x256xbf16, #tpu.memory_space<vmem>>, vector<1x256x256xbf16>
    %11 = vector.shape_cast %10 : vector<1x256x256xbf16> to vector<256x256xbf16>
    %12 = arith.extf %11 : vector<256x256xbf16> to vector<256x256xf32>
    %13 = vector.extract_strided_slice %4 {offsets = [0, 128], sizes = [256, 128], strides = [1, 1]} : vector<256x384xf32> to vector<256x128xf32>
    %cst_12 = arith.constant dense<0.000000e+00> : vector<256x128xf32>
    %14 = tpu.matmul %12, %13, %cst_12 {dimension_numbers = #tpu.dot_dimension_numbers<[1], [0], [0], [1], [0, 0, 1, 1], [], []>} : vector<256x256xf32>, vector<256x128xf32>, vector<256x128xf32> -> vector<256x128xf32>
    %c2 = arith.constant 2 : index
    %c0_13 = arith.constant 0 : index
    %c0_14 = arith.constant 0 : index
    %15 = vector.load %arg3[%c2, %c0_13, %c0_14] : memref<3x256x256xbf16, #tpu.memory_space<vmem>>, vector<1x256x256xbf16>
    %16 = vector.shape_cast %15 : vector<1x256x256xbf16> to vector<256x256xbf16>
    %17 = arith.extf %16 : vector<256x256xbf16> to vector<256x256xf32>
    %18 = vector.extract_strided_slice %4 {offsets = [0, 256], sizes = [256, 128], strides = [1, 1]} : vector<256x384xf32> to vector<256x128xf32>
    %cst_15 = arith.constant dense<0.000000e+00> : vector<256x128xf32>
    %19 = tpu.matmul %17, %18, %cst_15 {dimension_numbers = #tpu.dot_dimension_numbers<[1], [0], [0], [1], [0, 0, 1, 1], [], []>} : vector<256x256xf32>, vector<256x128xf32>, vector<256x128xf32> -> vector<256x128xf32>
    %20 = tpu.concatenate %9, %14, %19 in 1 : vector<256x128xf32>, vector<256x128xf32>, vector<256x128xf32> -> vector<256x384xf32>
    %c0_16 = arith.constant 0 : index
    %c0_17 = arith.constant 0 : index
    %21 = vector.load %arg4[%c0_16, %c0_17] : memref<384x256xbf16, #tpu.memory_space<vmem>>, vector<384x256xbf16>
    %22 = arith.extf %21 : vector<384x256xbf16> to vector<384x256xf32>
    %cst_18 = arith.constant dense<0.000000e+00> : vector<256x256xf32>
    %23 = tpu.matmul %20, %22, %cst_18 {dimension_numbers = #tpu.dot_dimension_numbers<[1], [0], [0], [1], [0, 0, 1, 1], [], []>} : vector<256x384xf32>, vector<384x256xf32>, vector<256x256xf32> -> vector<256x256xf32>
    %24 = arith.addf %2, %23 : vector<256x256xf32>
    %c0_19 = arith.constant 0 : index
    %c0_20 = arith.constant 0 : index
    %25 = vector.load %arg6[%c0_19, %c0_20] : memref<256x256xf32, #tpu.memory_space<vmem>>, vector<256x256xf32>
    tpu.vector_store %arg6[%c0_19, %c0_20], %24 {strides = array<i32>} : memref<256x256xf32, #tpu.memory_space<vmem>>, vector<256x256xf32>,
    return
  }
  func.func @transform_0(%arg0: i32) -> (i32, i32) {
    %c0_i32 = arith.constant 0 : i32
    %c0_i32_0 = arith.constant 0 : i32
    %c0_i32_1 = arith.constant 0 : i32
    return %c0_i32, %c0_i32_0 : i32, i32
  }
  func.func @transform_1(%arg0: i32) -> (i32, i32) {
    %c0_i32 = arith.constant 0 : i32
    %c0_i32_0 = arith.constant 0 : i32
    %c0_i32_1 = arith.constant 0 : i32
    return %c0_i32, %c0_i32_0 : i32, i32
  }
  func.func @transform_2(%arg0: i32) -> (i32, i32, i32) {
    %c0_i32 = arith.constant 0 : i32
    %c0_i32_0 = arith.constant 0 : i32
    %c0_i32_1 = arith.constant 0 : i32
    return %c0_i32, %arg0, %c0_i32_0 : i32, i32, i32
  }
  func.func @transform_3(%arg0: i32) -> (i32, i32) {
    %c0_i32 = arith.constant 0 : i32
    %c0_i32_0 = arith.constant 0 : i32
    %c0_i32_1 = arith.constant 0 : i32
    return %c0_i32, %c0_i32_0 : i32, i32
  }
  func.func @transform_4(%arg0: i32) -> (i32, i32) {
    %c0_i32 = arith.constant 0 : i32
    %c0_i32_0 = arith.constant 0 : i32
    %c0_i32_1 = arith.constant 0 : i32
    return %c0_i32, %c0_i32_0 : i32, i32
  }
  func.func @transform_5(%arg0: i32) -> (i32, i32) {
    %c0_i32 = arith.constant 0 : i32
    %c0_i32_0 = arith.constant 0 : i32
    return %arg0, %c0_i32 : i32, i32
  }
}

</mosaic_0001>

<llo_original>
// kernel: _lambda_.1
$region0: #{_lambda_.1}
  #allocation0 [shape = 'u32[]', space=smem, size = 0x4, offset = 0x4, fixed_abs, tag = 'smem constant byte address 0x4 - core index']
  #allocation1 [shape = 'u32[144,128]{1,0:T(1,128)}', space=vmem, size = 0x12000, scoped, tag = 'internal scratch']
  %s0 = inlined_call_operand.vmem [shape: bf16[256,256], index: 0, kind: input, shape index: {}]
  %s1 = inlined_call_operand.vmem [shape: bf16[256,384], index: 1, kind: input, shape index: {}]
  %s2 = inlined_call_operand.vmem [shape: bf16[3,256,256], index: 2, kind: input, shape index: {}]
  %s3 = inlined_call_operand.vmem [shape: bf16[384,256], index: 3, kind: input, shape index: {}]
  %s4 = inlined_call_operand.vmem [shape: bf16[256,256], index: 4, kind: input, shape index: {}]
  %s5 = inlined_call_operand.vmem [shape: f32[256,256], index: 5, kind: output, shape index: {}]
  %s6 = sld [smem:[#allocation0]]
  $region30: #{_lambda_.1} parent=0
    _
  %s8 = ssub.s32 1, %s6
  %s9 = scalar_select 0, %s8, %s6
  // Predicated region
  $region2: #{_lambda_.1} parent=0 // pred_check
    _
  $region3: #{_lambda_.1} parent=0 // pred_check_branch
    %11 = sbr.rel (0) target = $region5
  $region4: #{_lambda_.1} parent=0 // pred_region
    _
  $region5: #{_lambda_.1} parent=0 // pred_fallthru
    _
  // Predicated region
  $region6: #{_lambda_.1} parent=0 // pred_check
    _
  $region7: #{_lambda_.1} parent=0 // pred_check_branch
    %13 = sbr.rel (0) target = $region9
  $region8: #{_lambda_.1} parent=0 // pred_region
    _
  $region9: #{_lambda_.1} parent=0 // pred_fallthru
    _
  // Predicated region
  $region10: #{_lambda_.1} parent=0 // pred_check
    _
  $region11: #{_lambda_.1} parent=0 // pred_check_branch
    %15 = sbr.rel (0) target = $region13
  $region12: #{_lambda_.1} parent=0 // pred_region
    _
  $region13: #{_lambda_.1} parent=0 // pred_fallthru
    _
  // Predicated region
  $region14: #{_lambda_.1} parent=0 // pred_check
    _
  $region15: #{_lambda_.1} parent=0 // pred_check_branch
    %17 = sbr.rel (0) target = $region17
  $region16: #{_lambda_.1} parent=0 // pred_region
    _
  $region17: #{_lambda_.1} parent=0 // pred_fallthru
    _
  // Predicated region
  $region18: #{_lambda_.1} parent=0 // pred_check
    _
  $region19: #{_lambda_.1} parent=0 // pred_check_branch
    %19 = sbr.rel (0) target = $region21
  $region20: #{_lambda_.1} parent=0 // pred_region
    _
  $region21: #{_lambda_.1} parent=0 // pred_fallthru
    _
  %v21 = vld [vmem:[%s0] sm:$0xff]
  %v22 = vld [vmem:[%s0 + $0x8] sm:$0xff]
  %v23 = vld [vmem:[%s0 + $0x10] sm:$0xff]
  %v24 = vld [vmem:[%s0 + $0x18] sm:$0xff]
  %v25 = vld [vmem:[%s0 + $0x20] sm:$0xff]
  %v26 = vld [vmem:[%s0 + $0x28] sm:$0xff]
  %v27 = vld [vmem:[%s0 + $0x30] sm:$0xff]
  %v28 = vld [vmem:[%s0 + $0x38] sm:$0xff]
  %v29 = vld [vmem:[%s0 + $0x40] sm:$0xff]
  %v30 = vld [vmem:[%s0 + $0x48] sm:$0xff]
  %v31 = vld [vmem:[%s0 + $0x50] sm:$0xff]
  %v32 = vld [vmem:[%s0 + $0x58] sm:$0xff]
  %v33 = vld [vmem:[%s0 + $0x60] sm:$0xff]
  %v34 = vld [vmem:[%s0 + $0x68] sm:$0xff]
  %v35 = vld [vmem:[%s0 + $0x70] sm:$0xff]
  %v36 = vld [vmem:[%s0 + $0x78] sm:$0xff]
  %v37 = vld [vmem:[%s0 + $0x80] sm:$0xff]
  %v38 = vld [vmem:[%s0 + $0x88] sm:$0xff]
  %v39 = vld [vmem:[%s0 + $0x90] sm:$0xff]
  %v40 = vld [vmem:[%s0 + $0x98] sm:$0xff]
  %v41 = vld [vmem:[%s0 + $0xa0] sm:$0xff]
  %v42 = vld [vmem:[%s0 + $0xa8] sm:$0xff]
  %v43 = vld [vmem:[%s0 + $0xb0] sm:$0xff]
  %v44 = vld [vmem:[%s0 + $0xb8] sm:$0xff]
  %v45 = vld [vmem:[%s0 + $0xc0] sm:$0xff]
  %v46 = vld [vmem:[%s0 + $0xc8] sm:$0xff]
  %v47 = vld [vmem:[%s0 + $0xd0] sm:$0xff]
  %v48 = vld [vmem:[%s0 + $0xd8] sm:$0xff]
  %v49 = vld [vmem:[%s0 + $0xe0] sm:$0xff]
  %v50 = vld [vmem:[%s0 + $0xe8] sm:$0xff]
  %v51 = vld [vmem:[%s0 + $0xf0] sm:$0xff]
  %v52 = vld [vmem:[%s0 + $0xf8] sm:$0xff]
  %v53 = vld [vmem:[%s4] sm:$0xff]
  %v54 = vld [vmem:[%s4 + $0x8] sm:$0xff]
  %v55 = vld [vmem:[%s4 + $0x10] sm:$0xff]
  %v56 = vld [vmem:[%s4 + $0x18] sm:$0xff]
  %v57 = vld [vmem:[%s4 + $0x20] sm:$0xff]
  %v58 = vld [vmem:[%s4 + $0x28] sm:$0xff]
  %v59 = vld [vmem:[%s4 + $0x30] sm:$0xff]
  %v60 = vld [vmem:[%s4 + $0x38] sm:$0xff]
  %v61 = vld [vmem:[%s4 + $0x40] sm:$0xff]
  %v62 = vld [vmem:[%s4 + $0x48] sm:$0xff]
  %v63 = vld [vmem:[%s4 + $0x50] sm:$0xff]
  %v64 = vld [vmem:[%s4 + $0x58] sm:$0xff]
  %v65 = vld [vmem:[%s4 + $0x60] sm:$0xff]
  %v66 = vld [vmem:[%s4 + $0x68] sm:$0xff]
  %v67 = vld [vmem:[%s4 + $0x70] sm:$0xff]
  %v68 = vld [vmem:[%s4 + $0x78] sm:$0xff]
  %v69 = vld [vmem:[%s4 + $0x80] sm:$0xff]
  %v70 = vld [vmem:[%s4 + $0x88] sm:$0xff]
  %v71 = vld [vmem:[%s4 + $0x90] sm:$0xff]
  %v72 = vld [vmem:[%s4 + $0x98] sm:$0xff]
  %v73 = vld [vmem:[%s4 + $0xa0] sm:$0xff]
  %v74 = vld [vmem:[%s4 + $0xa8] sm:$0xff]
  %v75 = vld [vmem:[%s4 + $0xb0] sm:$0xff]
  %v76 = vld [vmem:[%s4 + $0xb8] sm:$0xff]
  %v77 = vld [vmem:[%s4 + $0xc0] sm:$0xff]
  %v78 = vld [vmem:[%s4 + $0xc8] sm:$0xff]
  %v79 = vld [vmem:[%s4 + $0xd0] sm:$0xff]
  %v80 = vld [vmem:[%s4 + $0xd8] sm:$0xff]
  %v81 = vld [vmem:[%s4 + $0xe0] sm:$0xff]
  %v82 = vld [vmem:[%s4 + $0xe8] sm:$0xff]
  %v83 = vld [vmem:[%s4 + $0xf0] sm:$0xff]
  %v84 = vld [vmem:[%s4 + $0xf8] sm:$0xff]
  %v85 = vld [vmem:[%s1] sm:$0xff]
  %v86 = vld [vmem:[%s1 + $0x8] sm:$0xf]
  %v87 = vld [vmem:[%s1 + $0xc] sm:$0xff]
  %v88 = vld [vmem:[%s1 + $0x14] sm:$0xf]
  %v89 = vld [vmem:[%s1 + $0x18] sm:$0xff]
  %v90 = vld [vmem:[%s1 + $0x20] sm:$0xf]
  %v91 = vld [vmem:[%s1 + $0x24] sm:$0xff]
  %v92 = vld [vmem:[%s1 + $0x2c] sm:$0xf]
  %v93 = vld [vmem:[%s1 + $0x30] sm:$0xff]
  %v94 = vld [vmem:[%s1 + $0x38] sm:$0xf]
  %v95 = vld [vmem:[%s1 + $0x3c] sm:$0xff]
  %v96 = vld [vmem:[%s1 + $0x44] sm:$0xf]
  %v97 = vld [vmem:[%s1 + $0x48] sm:$0xff]
  %v98 = vld [vmem:[%s1 + $0x50] sm:$0xf]
  %v99 = vld [vmem:[%s1 + $0x54] sm:$0xff]
  %v100 = vld [vmem:[%s1 + $0x5c] sm:$0xf]
  %v101 = vld [vmem:[%s1 + $0x60] sm:$0xff]
  %v102 = vld [vmem:[%s1 + $0x68] sm:$0xf]
  %v103 = vld [vmem:[%s1 + $0x6c] sm:$0xff]
  %v104 = vld [vmem:[%s1 + $0x74] sm:$0xf]
  %v105 = vld [vmem:[%s1 + $0x78] sm:$0xff]
  %v106 = vld [vmem:[%s1 + $0x80] sm:$0xf]
  %v107 = vld [vmem:[%s1 + $0x84] sm:$0xff]
  %v108 = vld [vmem:[%s1 + $0x8c] sm:$0xf]
  %v109 = vld [vmem:[%s1 + $0x90] sm:$0xff]
  %v110 = vld [vmem:[%s1 + $0x98] sm:$0xf]
  %v111 = vld [vmem:[%s1 + $0x9c] sm:$0xff]
  %v112 = vld [vmem:[%s1 + $0xa4] sm:$0xf]
  %v113 = vld [vmem:[%s1 + $0xa8] sm:$0xff]
  %v114 = vld [vmem:[%s1 + $0xb0] sm:$0xf]
  %v115 = vld [vmem:[%s1 + $0xb4] sm:$0xff]
  %v116 = vld [vmem:[%s1 + $0xbc] sm:$0xf]
  %v117 = vld [vmem:[%s1 + $0xc0] sm:$0xff]
  %v118 = vld [vmem:[%s1 + $0xc8] sm:$0xf]
  %v119 = vld [vmem:[%s1 + $0xcc] sm:$0xff]
  %v120 = vld [vmem:[%s1 + $0xd4] sm:$0xf]
  %v121 = vld [vmem:[%s1 + $0xd8] sm:$0xff]
  %v122 = vld [vmem:[%s1 + $0xe0] sm:$0xf]
  %v123 = vld [vmem:[%s1 + $0xe4] sm:$0xff]
  %v124 = vld [vmem:[%s1 + $0xec] sm:$0xf]
  %v125 = vld [vmem:[%s1 + $0xf0] sm:$0xff]
  %v126 = vld [vmem:[%s1 + $0xf8] sm:$0xf]
  %v127 = vld [vmem:[%s1 + $0xfc] sm:$0xff]
  %v128 = vld [vmem:[%s1 + $0x104] sm:$0xf]
  %v129 = vld [vmem:[%s1 + $0x108] sm:$0xff]
  %v130 = vld [vmem:[%s1 + $0x110] sm:$0xf]
  %v131 = vld [vmem:[%s1 + $0x114] sm:$0xff]
  %v132 = vld [vmem:[%s1 + $0x11c] sm:$0xf]
  %v133 = vld [vmem:[%s1 + $0x120] sm:$0xff]
  %v134 = vld [vmem:[%s1 + $0x128] sm:$0xf]
  %v135 = vld [vmem:[%s1 + $0x12c] sm:$0xff]
  %v136 = vld [vmem:[%s1 + $0x134] sm:$0xf]
  %v137 = vld [vmem:[%s1 + $0x138] sm:$0xff]
  %v138 = vld [vmem:[%s1 + $0x140] sm:$0xf]
  %v139 = vld [vmem:[%s1 + $0x144] sm:$0xff]
  %v140 = vld [vmem:[%s1 + $0x14c] sm:$0xf]
  %v141 = vld [vmem:[%s1 + $0x150] sm:$0xff]
  %v142 = vld [vmem:[%s1 + $0x158] sm:$0xf]
  %v143 = vld [vmem:[%s1 + $0x15c] sm:$0xff]
  %v144 = vld [vmem:[%s1 + $0x164] sm:$0xf]
  %v145 = vld [vmem:[%s1 + $0x168] sm:$0xff]
  %v146 = vld [vmem:[%s1 + $0x170] sm:$0xf]
  %v147 = vld [vmem:[%s1 + $0x174] sm:$0xff]
  %v148 = vld [vmem:[%s1 + $0x17c] sm:$0xf]
  %v181 = vunpack.c.l.b16 %v21
  %v182 = vunpack.c.h.b16 %v21
  %v183 = vunpack.c.l.b16 %v22
  %v184 = vunpack.c.h.b16 %v22
  %v185 = vunpack.c.l.b16 %v23
  %v186 = vunpack.c.h.b16 %v23
  %v187 = vunpack.c.l.b16 %v24
  %v188 = vunpack.c.h.b16 %v24
  %v189 = vunpack.c.l.b16 %v25
  %v190 = vunpack.c.h.b16 %v25
  %v191 = vunpack.c.l.b16 %v26
  %v192 = vunpack.c.h.b16 %v26
  %v193 = vunpack.c.l.b16 %v27
  %v194 = vunpack.c.h.b16 %v27
  %v195 = vunpack.c.l.b16 %v28
  %v196 = vunpack.c.h.b16 %v28
  %v197 = vunpack.c.l.b16 %v29
  %v198 = vunpack.c.h.b16 %v29
  %v199 = vunpack.c.l.b16 %v30
  %v200 = vunpack.c.h.b16 %v30
  %v201 = vunpack.c.l.b16 %v31
  %v202 = vunpack.c.h.b16 %v31
  %v203 = vunpack.c.l.b16 %v32
  %v204 = vunpack.c.h.b16 %v32
  %v205 = vunpack.c.l.b16 %v33
  %v206 = vunpack.c.h.b16 %v33
  %v207 = vunpack.c.l.b16 %v34
  %v208 = vunpack.c.h.b16 %v34
  %v209 = vunpack.c.l.b16 %v35
  %v210 = vunpack.c.h.b16 %v35
  %v211 = vunpack.c.l.b16 %v36
  %v212 = vunpack.c.h.b16 %v36
  %v213 = vunpack.c.l.b16 %v37
  %v214 = vunpack.c.h.b16 %v37
  %v215 = vunpack.c.l.b16 %v38
  %v216 = vunpack.c.h.b16 %v38
  %v217 = vunpack.c.l.b16 %v39
  %v218 = vunpack.c.h.b16 %v39
  %v219 = vunpack.c.l.b16 %v40
  %v220 = vunpack.c.h.b16 %v40
  %v221 = vunpack.c.l.b16 %v41
  %v222 = vunpack.c.h.b16 %v41
  %v223 = vunpack.c.l.b16 %v42
  %v224 = vunpack.c.h.b16 %v42
  %v225 = vunpack.c.l.b16 %v43
  %v226 = vunpack.c.h.b16 %v43
  %v227 = vunpack.c.l.b16 %v44
  %v228 = vunpack.c.h.b16 %v44
  %v229 = vunpack.c.l.b16 %v45
  %v230 = vunpack.c.h.b16 %v45
  %v231 = vunpack.c.l.b16 %v46
  %v232 = vunpack.c.h.b16 %v46
  %v233 = vunpack.c.l.b16 %v47
  %v234 = vunpack.c.h.b16 %v47
  %v235 = vunpack.c.l.b16 %v48
  %v236 = vunpack.c.h.b16 %v48
  %v237 = vunpack.c.l.b16 %v49
  %v238 = vunpack.c.h.b16 %v49
  %v239 = vunpack.c.l.b16 %v50
  %v240 = vunpack.c.h.b16 %v50
  %v241 = vunpack.c.l.b16 %v51
  %v242 = vunpack.c.h.b16 %v51
  %v243 = vunpack.c.l.b16 %v52
  %v244 = vunpack.c.h.b16 %v52
  %v245 = vpack.c.b16 %v183, %v181
  %v246 = vpack.c.b16 %v184, %v182
  %v247 = vpack.c.b16 %v187, %v185
  %v248 = vpack.c.b16 %v188, %v186
  %v249 = vpack.c.b16 %v191, %v189
  %v250 = vpack.c.b16 %v192, %v190
  %v251 = vpack.c.b16 %v195, %v193
  %v252 = vpack.c.b16 %v196, %v194
  %v253 = vpack.c.b16 %v199, %v197
  %v254 = vpack.c.b16 %v200, %v198
  %v255 = vpack.c.b16 %v203, %v201
  %v256 = vpack.c.b16 %v204, %v202
  %v257 = vpack.c.b16 %v207, %v205
  %v258 = vpack.c.b16 %v208, %v206
  %v259 = vpack.c.b16 %v211, %v209
  %v260 = vpack.c.b16 %v212, %v210
  %v261 = vpack.c.b16 %v215, %v213
  %v262 = vpack.c.b16 %v216, %v214
  %v263 = vpack.c.b16 %v219, %v217
  %v264 = vpack.c.b16 %v220, %v218
  %v265 = vpack.c.b16 %v223, %v221
  %v266 = vpack.c.b16 %v224, %v222
  %v267 = vpack.c.b16 %v227, %v225
  %v268 = vpack.c.b16 %v228, %v226
  %v269 = vpack.c.b16 %v231, %v229
  %v270 = vpack.c.b16 %v232, %v230
  %v271 = vpack.c.b16 %v235, %v233
  %v272 = vpack.c.b16 %v236, %v234
  %v273 = vpack.c.b16 %v239, %v237
  %v274 = vpack.c.b16 %v240, %v238
  %v275 = vpack.c.b16 %v243, %v241
  %v276 = vpack.c.b16 %v244, %v242
  %v373 = vunpack.c.l.b16 %v85
  %v374 = vunpack.c.h.b16 %v85
  %v375 = vunpack.c.l.b16 %v86
  %v376 = vunpack.c.l.b16 %v87
  %v377 = vunpack.c.h.b16 %v87
  %v378 = vunpack.c.l.b16 %v88
  %v379 = vunpack.c.l.b16 %v89
  %v380 = vunpack.c.h.b16 %v89
  %v381 = vunpack.c.l.b16 %v90
  %v382 = vunpack.c.l.b16 %v91
  %v383 = vunpack.c.h.b16 %v91
  %v384 = vunpack.c.l.b16 %v92
  %v385 = vunpack.c.l.b16 %v93
  %v386 = vunpack.c.h.b16 %v93
  %v387 = vunpack.c.l.b16 %v94
  %v388 = vunpack.c.l.b16 %v95
  %v389 = vunpack.c.h.b16 %v95
  %v390 = vunpack.c.l.b16 %v96
  %v391 = vunpack.c.l.b16 %v97
  %v392 = vunpack.c.h.b16 %v97
  %v393 = vunpack.c.l.b16 %v98
  %v394 = vunpack.c.l.b16 %v99
  %v395 = vunpack.c.h.b16 %v99
  %v396 = vunpack.c.l.b16 %v100
  %v397 = vunpack.c.l.b16 %v101
  %v398 = vunpack.c.h.b16 %v101
  %v399 = vunpack.c.l.b16 %v102
  %v400 = vunpack.c.l.b16 %v103
  %v401 = vunpack.c.h.b16 %v103
  %v402 = vunpack.c.l.b16 %v104
  %v403 = vunpack.c.l.b16 %v105
  %v404 = vunpack.c.h.b16 %v105
  %v405 = vunpack.c.l.b16 %v106
  %v406 = vunpack.c.l.b16 %v107
  %v407 = vunpack.c.h.b16 %v107
  %v408 = vunpack.c.l.b16 %v108
  %v409 = vunpack.c.l.b16 %v109
  %v410 = vunpack.c.h.b16 %v109
  %v411 = vunpack.c.l.b16 %v110
  %v412 = vunpack.c.l.b16 %v111
  %v413 = vunpack.c.h.b16 %v111
  %v414 = vunpack.c.l.b16 %v112
  %v415 = vunpack.c.l.b16 %v113
  %v416 = vunpack.c.h.b16 %v113
  %v417 = vunpack.c.l.b16 %v114
  %v418 = vunpack.c.l.b16 %v115
  %v419 = vunpack.c.h.b16 %v115
  %v420 = vunpack.c.l.b16 %v116
  %v421 = vunpack.c.l.b16 %v117
  %v422 = vunpack.c.h.b16 %v117
  %v423 = vunpack.c.l.b16 %v118
  %v424 = vunpack.c.l.b16 %v119
  %v425 = vunpack.c.h.b16 %v119
  %v426 = vunpack.c.l.b16 %v120
  %v427 = vunpack.c.l.b16 %v121
  %v428 = vunpack.c.h.b16 %v121
  %v429 = vunpack.c.l.b16 %v122
  %v430 = vunpack.c.l.b16 %v123
  %v431 = vunpack.c.h.b16 %v123
  %v432 = vunpack.c.l.b16 %v124
  %v433 = vunpack.c.l.b16 %v125
  %v434 = vunpack.c.h.b16 %v125
  %v435 = vunpack.c.l.b16 %v126
  %v436 = vunpack.c.l.b16 %v127
  %v437 = vunpack.c.h.b16 %v127
  %v438 = vunpack.c.l.b16 %v128
  %v439 = vunpack.c.l.b16 %v129
  %v440 = vunpack.c.h.b16 %v129
  %v441 = vunpack.c.l.b16 %v130
  %v442 = vunpack.c.l.b16 %v131
  %v443 = vunpack.c.h.b16 %v131
  %v444 = vunpack.c.l.b16 %v132
  %v445 = vunpack.c.l.b16 %v133
  %v446 = vunpack.c.h.b16 %v133
  %v447 = vunpack.c.l.b16 %v134
  %v448 = vunpack.c.l.b16 %v135
  %v449 = vunpack.c.h.b16 %v135
  %v450 = vunpack.c.l.b16 %v136
  %v451 = vunpack.c.l.b16 %v137
  %v452 = vunpack.c.h.b16 %v137
  %v453 = vunpack.c.l.b16 %v138
  %v454 = vunpack.c.l.b16 %v139
  %v455 = vunpack.c.h.b16 %v139
  %v456 = vunpack.c.l.b16 %v140
  %v457 = vunpack.c.l.b16 %v141
  %v458 = vunpack.c.h.b16 %v141
  %v459 = vunpack.c.l.b16 %v142
  %v460 = vunpack.c.l.b16 %v143
  %v461 = vunpack.c.h.b16 %v143
  %v462 = vunpack.c.l.b16 %v144
  %v463 = vunpack.c.l.b16 %v145
  %v464 = vunpack.c.h.b16 %v145
  %v465 = vunpack.c.l.b16 %v146
  %v466 = vunpack.c.l.b16 %v147
  %v467 = vunpack.c.h.b16 %v147
  %v468 = vunpack.c.l.b16 %v148
  %v469 = vpack.c.b16 %v376, %v373
  %v470 = vpack.c.b16 %v377, %v374
  %v471 = vpack.c.b16 %v378, %v375
  %v472 = vpack.c.b16 %v382, %v379
  %v473 = vpack.c.b16 %v383, %v380
  %v474 = vpack.c.b16 %v384, %v381
  %v475 = vpack.c.b16 %v388, %v385
  %v476 = vpack.c.b16 %v389, %v386
  %v477 = vpack.c.b16 %v390, %v387
  %v478 = vpack.c.b16 %v394, %v391
  %v479 = vpack.c.b16 %v395, %v392
  %v480 = vpack.c.b16 %v396, %v393
  %v481 = vpack.c.b16 %v400, %v397
  %v482 = vpack.c.b16 %v401, %v398
  %v483 = vpack.c.b16 %v402, %v399
  %v484 = vpack.c.b16 %v406, %v403
  %v485 = vpack.c.b16 %v407, %v404
  %v486 = vpack.c.b16 %v408, %v405
  %v487 = vpack.c.b16 %v412, %v409
  %v488 = vpack.c.b16 %v413, %v410
  %v489 = vpack.c.b16 %v414, %v411
  %v490 = vpack.c.b16 %v418, %v415
  %v491 = vpack.c.b16 %v419, %v416
  %v492 = vpack.c.b16 %v420, %v417
  %v493 = vpack.c.b16 %v424, %v421
  %v494 = vpack.c.b16 %v425, %v422
  %v495 = vpack.c.b16 %v426, %v423
  %v496 = vpack.c.b16 %v430, %v427
  %v497 = vpack.c.b16 %v431, %v428
  %v498 = vpack.c.b16 %v432, %v429
  %v499 = vpack.c.b16 %v436, %v433
  %v500 = vpack.c.b16 %v437, %v434
  %v501 = vpack.c.b16 %v438, %v435
  %v502 = vpack.c.b16 %v442, %v439
  %v503 = vpack.c.b16 %v443, %v440
  %v504 = vpack.c.b16 %v444, %v441
  %v505 = vpack.c.b16 %v448, %v445
  %v506 = vpack.c.b16 %v449, %v446
  %v507 = vpack.c.b16 %v450, %v447
  %v508 = vpack.c.b16 %v454, %v451
  %v509 = vpack.c.b16 %v455, %v452
  %v510 = vpack.c.b16 %v456, %v453
  %v511 = vpack.c.b16 %v460, %v457
  %v512 = vpack.c.b16 %v461, %v458
  %v513 = vpack.c.b16 %v462, %v459
  %v514 = vpack.c.b16 %v466, %v463
  %v515 = vpack.c.b16 %v467, %v464
  %v516 = vpack.c.b16 %v468, %v465
  %565 = vmatprep.subr.bf16.mxu0 %v491
  %566 = vmatpush1.bf16.msra.mxu0 %v490
  %567 = vmatprep.subr.bf16.mxu0 %v488
  %568 = vmatpush1.bf16.msra.mxu0 %v487
  %569 = vmatprep.subr.bf16.mxu0 %v485
  %570 = vmatpush1.bf16.msra.mxu0 %v484
  %571 = vmatprep.subr.bf16.mxu0 %v482
  %572 = vmatpush1.bf16.msra.mxu0 %v481
  %573 = vmatprep.subr.bf16.mxu0 %v479
  %574 = vmatpush1.bf16.msra.mxu0 %v478
  %575 = vmatprep.subr.bf16.mxu0 %v476
  %576 = vmatpush1.bf16.msra.mxu0 %v475
  %577 = vmatprep.subr.bf16.mxu0 %v473
  %578 = vmatpush1.bf16.msra.mxu0 %v472
  %579 = vmatprep.subr.bf16.mxu0 %v470
  %580 = vmatpush1.bf16.msra.mxu0 %v469
  %581 = vmatprep.subr.bf16.mxu0 %v515
  %582 = vmatpush2.bf16.msra.mxu0 %v514
  %583 = vmatprep.subr.bf16.mxu0 %v512
  %584 = vmatpush2.bf16.msra.mxu0 %v511
  %585 = vmatprep.subr.bf16.mxu0 %v509
  %586 = vmatpush2.bf16.msra.mxu0 %v508
  %587 = vmatprep.subr.bf16.mxu0 %v506
  %588 = vmatpush2.bf16.msra.mxu0 %v505
  %589 = vmatprep.subr.bf16.mxu0 %v503
  %590 = vmatpush2.bf16.msra.mxu0 %v502
  %591 = vmatprep.subr.bf16.mxu0 %v500
  %592 = vmatpush2.bf16.msra.mxu0 %v499
  %593 = vmatprep.subr.bf16.mxu0 %v497
  %594 = vmatpush2.bf16.msra.mxu0 %v496
  %595 = vmatprep.subr.bf16.mxu0 %v494
  %596 = vmatpush2.bf16.msra.mxu0 %v493
  %597 = vmatprep.mubr.bf16.mxu0 %v246
  %598 = vmatmul.mubr.bf16.gmra.mxu0 %v245
  %v599 = vpop.f32.mrf.mxu0
  %v600 = vadd.f32 0.0, %v599
  %v601 = vpop.f32.mrf.mxu0
  %v602 = vadd.f32 0.0, %v601
  %v603 = vpop.f32.mrf.mxu0
  %v604 = vadd.f32 0.0, %v603
  %v605 = vpop.f32.mrf.mxu0
  %v606 = vadd.f32 0.0, %v605
  %607 = vmatprep.mubr.bf16.mxu0 %v248
  %608 = vmatmul.mubr.bf16.gmra.mxu0 %v247
  %v609 = vpop.f32.mrf.mxu0
  %v610 = vadd.f32 0.0, %v609
  %v611 = vpop.f32.mrf.mxu0
  %v612 = vadd.f32 0.0, %v611
  %v613 = vpop.f32.mrf.mxu0
  %v614 = vadd.f32 0.0, %v613
  %v615 = vpop.f32.mrf.mxu0
  %v616 = vadd.f32 0.0, %v615
  %617 = vmatprep.mubr.bf16.mxu0 %v250
  %618 = vmatmul.mubr.bf16.gmra.mxu0 %v249
  %v619 = vpop.f32.mrf.mxu0
  %v620 = vadd.f32 0.0, %v619
  %v621 = vpop.f32.mrf.mxu0
  %v622 = vadd.f32 0.0, %v621
  %v623 = vpop.f32.mrf.mxu0
  %v624 = vadd.f32 0.0, %v623
  %v625 = vpop.f32.mrf.mxu0
  %v626 = vadd.f32 0.0, %v625
  %627 = vmatprep.mubr.bf16.mxu0 %v252
  %628 = vmatmul.mubr.bf16.gmra.mxu0 %v251
  %v629 = vpop.f32.mrf.mxu0
  %v630 = vadd.f32 0.0, %v629
  %v631 = vpop.f32.mrf.mxu0
  %v632 = vadd.f32 0.0, %v631
  %v633 = vpop.f32.mrf.mxu0
  %v634 = vadd.f32 0.0, %v633
  %v635 = vpop.f32.mrf.mxu0
  %v636 = vadd.f32 0.0, %v635
  %637 = vmatprep.mubr.bf16.mxu0 %v254
  %638 = vmatmul.mubr.bf16.gmra.mxu0 %v253
  %v639 = vpop.f32.mrf.mxu0
  %v640 = vadd.f32 0.0, %v639
  %v641 = vpop.f32.mrf.mxu0
  %v642 = vadd.f32 0.0, %v641
  %v643 = vpop.f32.mrf.mxu0
  %v644 = vadd.f32 0.0, %v643
  %v645 = vpop.f32.mrf.mxu0
  %v646 = vadd.f32 0.0, %v645
  %647 = vmatprep.mubr.bf16.mxu0 %v256
  %648 = vmatmul.mubr.bf16.gmra.mxu0 %v255
  %v649 = vpop.f32.mrf.mxu0
  %v650 = vadd.f32 0.0, %v649
  %v651 = vpop.f32.mrf.mxu0
  %v652 = vadd.f32 0.0, %v651
  %v653 = vpop.f32.mrf.mxu0
  %v654 = vadd.f32 0.0, %v653
  %v655 = vpop.f32.mrf.mxu0
  %v656 = vadd.f32 0.0, %v655
  %657 = vmatprep.mubr.bf16.mxu0 %v258
  %658 = vmatmul.mubr.bf16.gmra.mxu0 %v257
  %v659 = vpop.f32.mrf.mxu0
  %v660 = vadd.f32 0.0, %v659
  %v661 = vpop.f32.mrf.mxu0
  %v662 = vadd.f32 0.0, %v661
  %v663 = vpop.f32.mrf.mxu0
  %v664 = vadd.f32 0.0, %v663
  %v665 = vpop.f32.mrf.mxu0
  %v666 = vadd.f32 0.0, %v665
  %667 = vmatprep.mubr.bf16.mxu0 %v260
  %668 = vmatmul.mubr.bf16.gmra.mxu0 %v259
  %v669 = vpop.f32.mrf.mxu0
  %v670 = vadd.f32 0.0, %v669
  %v671 = vpop.f32.mrf.mxu0
  %v672 = vadd.f32 0.0, %v671
  %v673 = vpop.f32.mrf.mxu0
  %v674 = vadd.f32 0.0, %v673
  %v675 = vpop.f32.mrf.mxu0
  %v676 = vadd.f32 0.0, %v675
  %677 = vmatprep.mubr.bf16.mxu0 %v262
  %678 = vmatmul.mubr.bf16.gmra.mxu0 %v261
  %v679 = vpop.f32.mrf.mxu0
  %v680 = vadd.f32 0.0, %v679
  %v681 = vpop.f32.mrf.mxu0
  %v682 = vadd.f32 0.0, %v681
  %v683 = vpop.f32.mrf.mxu0
  %v684 = vadd.f32 0.0, %v683
  %v685 = vpop.f32.mrf.mxu0
  %v686 = vadd.f32 0.0, %v685
  %687 = vmatprep.mubr.bf16.mxu0 %v264
  %688 = vmatmul.mubr.bf16.gmra.mxu0 %v263
  %v689 = vpop.f32.mrf.mxu0
  %v690 = vadd.f32 0.0, %v689
  %v691 = vpop.f32.mrf.mxu0
  %v692 = vadd.f32 0.0, %v691
  %v693 = vpop.f32.mrf.mxu0
  %v694 = vadd.f32 0.0, %v693
  %v695 = vpop.f32.mrf.mxu0
  %v696 = vadd.f32 0.0, %v695
  %697 = vmatprep.mubr.bf16.mxu0 %v266
  %698 = vmatmul.mubr.bf16.gmra.mxu0 %v265
  %v699 = vpop.f32.mrf.mxu0
  %v700 = vadd.f32 0.0, %v699
  %v701 = vpop.f32.mrf.mxu0
  %v702 = vadd.f32 0.0, %v701
  %v703 = vpop.f32.mrf.mxu0
  %v704 = vadd.f32 0.0, %v703
  %v705 = vpop.f32.mrf.mxu0
  %v706 = vadd.f32 0.0, %v705
  %707 = vmatprep.mubr.bf16.mxu0 %v268
  %708 = vmatmul.mubr.bf16.gmra.mxu0 %v267
  %v709 = vpop.f32.mrf.mxu0
  %v710 = vadd.f32 0.0, %v709
  %v711 = vpop.f32.mrf.mxu0
  %v712 = vadd.f32 0.0, %v711
  %v713 = vpop.f32.mrf.mxu0
  %v714 = vadd.f32 0.0, %v713
  %v715 = vpop.f32.mrf.mxu0
  %v716 = vadd.f32 0.0, %v715
  %717 = vmatprep.mubr.bf16.mxu0 %v270
  %718 = vmatmul.mubr.bf16.gmra.mxu0 %v269
  %v719 = vpop.f32.mrf.mxu0
  %v720 = vadd.f32 0.0, %v719
  %v721 = vpop.f32.mrf.mxu0
  %v722 = vadd.f32 0.0, %v721
  %v723 = vpop.f32.mrf.mxu0
  %v724 = vadd.f32 0.0, %v723
  %v725 = vpop.f32.mrf.mxu0
  %v726 = vadd.f32 0.0, %v725
  %727 = vmatprep.mubr.bf16.mxu0 %v272
  %728 = vmatmul.mubr.bf16.gmra.mxu0 %v271
  %v729 = vpop.f32.mrf.mxu0
  %v730 = vadd.f32 0.0, %v729
  %v731 = vpop.f32.mrf.mxu0
  %v732 = vadd.f32 0.0, %v731
  %v733 = vpop.f32.mrf.mxu0
  %v734 = vadd.f32 0.0, %v733
  %v735 = vpop.f32.mrf.mxu0
  %v736 = vadd.f32 0.0, %v735
  %737 = vmatprep.mubr.bf16.mxu0 %v274
  %738 = vmatmul.mubr.bf16.gmra.mxu0 %v273
  %v739 = vpop.f32.mrf.mxu0
  %v740 = vadd.f32 0.0, %v739
  %v741 = vpop.f32.mrf.mxu0
  %v742 = vadd.f32 0.0, %v741
  %v743 = vpop.f32.mrf.mxu0
  %v744 = vadd.f32 0.0, %v743
  %v745 = vpop.f32.mrf.mxu0
  %v746 = vadd.f32 0.0, %v745
  %747 = vmatprep.mubr.bf16.mxu0 %v276
  %748 = vmatmul.mubr.bf16.gmra.mxu0 %v275
  %v749 = vpop.f32.mrf.mxu0
  %v750 = vadd.f32 0.0, %v749
  %v751 = vpop.f32.mrf.mxu0
  %v752 = vadd.f32 0.0, %v751
  %v753 = vpop.f32.mrf.mxu0
  %v754 = vadd.f32 0.0, %v753
  %v755 = vpop.f32.mrf.mxu0
  %v756 = vadd.f32 0.0, %v755
  %757 = vdwg.mxu0
  %758 = vmatprep.subr.bf16.mxu0 0
  %759 = vmatpush1.bf16.msra.mxu0 %v492
  %760 = vmatprep.subr.bf16.mxu0 0
  %761 = vmatpush1.bf16.msra.mxu0 %v489
  %762 = vmatprep.subr.bf16.mxu0 0
  %763 = vmatpush1.bf16.msra.mxu0 %v486
  %764 = vmatprep.subr.bf16.mxu0 0
  %765 = vmatpush1.bf16.msra.mxu0 %v483
  %766 = vmatprep.subr.bf16.mxu0 0
  %767 = vmatpush1.bf16.msra.mxu0 %v480
  %768 = vmatprep.subr.bf16.mxu0 0
  %769 = vmatpush1.bf16.msra.mxu0 %v477
  %770 = vmatprep.subr.bf16.mxu0 0
  %771 = vmatpush1.bf16.msra.mxu0 %v474
  %772 = vmatprep.subr.bf16.mxu0 0
  %773 = vmatpush1.bf16.msra.mxu0 %v471
  %774 = vmatprep.subr.bf16.mxu0 0
  %775 = vmatpush2.bf16.msra.mxu0 %v516
  %776 = vmatprep.subr.bf16.mxu0 0
  %777 = vmatpush2.bf16.msra.mxu0 %v513
  %778 = vmatprep.subr.bf16.mxu0 0
  %779 = vmatpush2.bf16.msra.mxu0 %v510
  %780 = vmatprep.subr.bf16.mxu0 0
  %781 = vmatpush2.bf16.msra.mxu0 %v507
  %782 = vmatprep.subr.bf16.mxu0 0
  %783 = vmatpush2.bf16.msra.mxu0 %v504
  %784 = vmatprep.subr.bf16.mxu0 0
  %785 = vmatpush2.bf16.msra.mxu0 %v501
  %786 = vmatprep.subr.bf16.mxu0 0
  %787 = vmatpush2.bf16.msra.mxu0 %v498
  %788 = vmatprep.subr.bf16.mxu0 0
  %789 = vmatpush2.bf16.msra.mxu0 %v495
  %790 = vmatprep.mubr.bf16.mxu0 %v246
  %791 = vmatmul.mubr.bf16.gmra.mxu0 %v245
  %v792 = vpop.f32.mrf.mxu0
  %v793 = vadd.f32 0.0, %v792
  %v794 = vpop.f32.mrf.mxu0
  %v795 = vpop.f32.mrf.mxu0
  %v796 = vadd.f32 0.0, %v795
  %v797 = vpop.f32.mrf.mxu0
  %798 = vmatprep.mubr.bf16.mxu0 %v248
  %799 = vmatmul.mubr.bf16.gmra.mxu0 %v247
  %v800 = vpop.f32.mrf.mxu0
  %v801 = vadd.f32 0.0, %v800
  %v802 = vpop.f32.mrf.mxu0
  %v803 = vpop.f32.mrf.mxu0
  %v804 = vadd.f32 0.0, %v803
  %v805 = vpop.f32.mrf.mxu0
  %806 = vmatprep.mubr.bf16.mxu0 %v250
  %807 = vmatmul.mubr.bf16.gmra.mxu0 %v249
  %v808 = vpop.f32.mrf.mxu0
  %v809 = vadd.f32 0.0, %v808
  %v810 = vpop.f32.mrf.mxu0
  %v811 = vpop.f32.mrf.mxu0
  %v812 = vadd.f32 0.0, %v811
  %v813 = vpop.f32.mrf.mxu0
  %814 = vmatprep.mubr.bf16.mxu0 %v252
  %815 = vmatmul.mubr.bf16.gmra.mxu0 %v251
  %v816 = vpop.f32.mrf.mxu0
  %v817 = vadd.f32 0.0, %v816
  %v818 = vpop.f32.mrf.mxu0
  %v819 = vpop.f32.mrf.mxu0
  %v820 = vadd.f32 0.0, %v819
  %v821 = vpop.f32.mrf.mxu0
  %822 = vmatprep.mubr.bf16.mxu0 %v254
  %823 = vmatmul.mubr.bf16.gmra.mxu0 %v253
  %v824 = vpop.f32.mrf.mxu0
  %v825 = vadd.f32 0.0, %v824
  %v826 = vpop.f32.mrf.mxu0
  %v827 = vpop.f32.mrf.mxu0
  %v828 = vadd.f32 0.0, %v827
  %v829 = vpop.f32.mrf.mxu0
  %830 = vmatprep.mubr.bf16.mxu0 %v256
  %831 = vmatmul.mubr.bf16.gmra.mxu0 %v255
  %v832 = vpop.f32.mrf.mxu0
  %v833 = vadd.f32 0.0, %v832
  %v834 = vpop.f32.mrf.mxu0
  %v835 = vpop.f32.mrf.mxu0
  %v836 = vadd.f32 0.0, %v835
  %v837 = vpop.f32.mrf.mxu0
  %838 = vmatprep.mubr.bf16.mxu0 %v258
  %839 = vmatmul.mubr.bf16.gmra.mxu0 %v257
  %v840 = vpop.f32.mrf.mxu0
  %v841 = vadd.f32 0.0, %v840
  %v842 = vpop.f32.mrf.mxu0
  %v843 = vpop.f32.mrf.mxu0
  %v844 = vadd.f32 0.0, %v843
  %v845 = vpop.f32.mrf.mxu0
  %846 = vmatprep.mubr.bf16.mxu0 %v260
  %847 = vmatmul.mubr.bf16.gmra.mxu0 %v259
  %v848 = vpop.f32.mrf.mxu0
  %v849 = vadd.f32 0.0, %v848
  %v850 = vpop.f32.mrf.mxu0
  %v851 = vpop.f32.mrf.mxu0
  %v852 = vadd.f32 0.0, %v851
  %v853 = vpop.f32.mrf.mxu0
  %854 = vmatprep.mubr.bf16.mxu0 %v262
  %855 = vmatmul.mubr.bf16.gmra.mxu0 %v261
  %v856 = vpop.f32.mrf.mxu0
  %v857 = vadd.f32 0.0, %v856
  %v858 = vpop.f32.mrf.mxu0
  %v859 = vpop.f32.mrf.mxu0
  %v860 = vadd.f32 0.0, %v859
  %v861 = vpop.f32.mrf.mxu0
  %862 = vmatprep.mubr.bf16.mxu0 %v264
  %863 = vmatmul.mubr.bf16.gmra.mxu0 %v263
  %v864 = vpop.f32.mrf.mxu0
  %v865 = vadd.f32 0.0, %v864
  %v866 = vpop.f32.mrf.mxu0
  %v867 = vpop.f32.mrf.mxu0
  %v868 = vadd.f32 0.0, %v867
  %v869 = vpop.f32.mrf.mxu0
  %870 = vmatprep.mubr.bf16.mxu0 %v266
  %871 = vmatmul.mubr.bf16.gmra.mxu0 %v265
  %v872 = vpop.f32.mrf.mxu0
  %v873 = vadd.f32 0.0, %v872
  %v874 = vpop.f32.mrf.mxu0
  %v875 = vpop.f32.mrf.mxu0
  %v876 = vadd.f32 0.0, %v875
  %v877 = vpop.f32.mrf.mxu0
  %878 = vmatprep.mubr.bf16.mxu0 %v268
  %879 = vmatmul.mubr.bf16.gmra.mxu0 %v267
  %v880 = vpop.f32.mrf.mxu0
  %v881 = vadd.f32 0.0, %v880
  %v882 = vpop.f32.mrf.mxu0
  %v883 = vpop.f32.mrf.mxu0
  %v884 = vadd.f32 0.0, %v883
  %v885 = vpop.f32.mrf.mxu0
  %886 = vmatprep.mubr.bf16.mxu0 %v270
  %887 = vmatmul.mubr.bf16.gmra.mxu0 %v269
  %v888 = vpop.f32.mrf.mxu0
  %v889 = vadd.f32 0.0, %v888
  %v890 = vpop.f32.mrf.mxu0
  %v891 = vpop.f32.mrf.mxu0
  %v892 = vadd.f32 0.0, %v891
  %v893 = vpop.f32.mrf.mxu0
  %894 = vmatprep.mubr.bf16.mxu0 %v272
  %895 = vmatmul.mubr.bf16.gmra.mxu0 %v271
  %v896 = vpop.f32.mrf.mxu0
  %v897 = vadd.f32 0.0, %v896
  %v898 = vpop.f32.mrf.mxu0
  %v899 = vpop.f32.mrf.mxu0
  %v900 = vadd.f32 0.0, %v899
  %v901 = vpop.f32.mrf.mxu0
  %902 = vmatprep.mubr.bf16.mxu0 %v274
  %903 = vmatmul.mubr.bf16.gmra.mxu0 %v273
  %v904 = vpop.f32.mrf.mxu0
  %v905 = vadd.f32 0.0, %v904
  %v906 = vpop.f32.mrf.mxu0
  %v907 = vpop.f32.mrf.mxu0
  %v908 = vadd.f32 0.0, %v907
  %v909 = vpop.f32.mrf.mxu0
  %910 = vmatprep.mubr.bf16.mxu0 %v276
  %911 = vmatmul.mubr.bf16.gmra.mxu0 %v275
  %v912 = vpop.f32.mrf.mxu0
  %v913 = vadd.f32 0.0, %v912
  %v914 = vpop.f32.mrf.mxu0
  %v915 = vpop.f32.mrf.mxu0
  %v916 = vadd.f32 0.0, %v915
  %v917 = vpop.f32.mrf.mxu0
  %918 = vdwg.mxu0
  %v919 = vld [vmem:[%s2] sm:$0xff]
  %v920 = vld [vmem:[%s2 + $0x8] sm:$0xff]
  %v921 = vld [vmem:[%s2 + $0x10] sm:$0xff]
  %v922 = vld [vmem:[%s2 + $0x18] sm:$0xff]
  %v923 = vld [vmem:[%s2 + $0x20] sm:$0xff]
  %v924 = vld [vmem:[%s2 + $0x28] sm:$0xff]
  %v925 = vld [vmem:[%s2 + $0x30] sm:$0xff]
  %v926 = vld [vmem:[%s2 + $0x38] sm:$0xff]
  %v927 = vld [vmem:[%s2 + $0x40] sm:$0xff]
  %v928 = vld [vmem:[%s2 + $0x48] sm:$0xff]
  %v929 = vld [vmem:[%s2 + $0x50] sm:$0xff]
  %v930 = vld [vmem:[%s2 + $0x58] sm:$0xff]
  %v931 = vld [vmem:[%s2 + $0x60] sm:$0xff]
  %v932 = vld [vmem:[%s2 + $0x68] sm:$0xff]
  %v933 = vld [vmem:[%s2 + $0x70] sm:$0xff]
  %v934 = vld [vmem:[%s2 + $0x78] sm:$0xff]
  %v935 = vld [vmem:[%s2 + $0x80] sm:$0xff]
  %v936 = vld [vmem:[%s2 + $0x88] sm:$0xff]
  %v937 = vld [vmem:[%s2 + $0x90] sm:$0xff]
  %v938 = vld [vmem:[%s2 + $0x98] sm:$0xff]
  %v939 = vld [vmem:[%s2 + $0xa0] sm:$0xff]
  %v940 = vld [vmem:[%s2 + $0xa8] sm:$0xff]
  %v941 = vld [vmem:[%s2 + $0xb0] sm:$0xff]
  %v942 = vld [vmem:[%s2 + $0xb8] sm:$0xff]
  %v943 = vld [vmem:[%s2 + $0xc0] sm:$0xff]
  %v944 = vld [vmem:[%s2 + $0xc8] sm:$0xff]
  %v945 = vld [vmem:[%s2 + $0xd0] sm:$0xff]
  %v946 = vld [vmem:[%s2 + $0xd8] sm:$0xff]
  %v947 = vld [vmem:[%s2 + $0xe0] sm:$0xff]
  %v948 = vld [vmem:[%s2 + $0xe8] sm:$0xff]
  %v949 = vld [vmem:[%s2 + $0xf0] sm:$0xff]
  %v950 = vld [vmem:[%s2 + $0xf8] sm:$0xff]
  %v951 = vunpack.c.l.bf16 %v919
  %v952 = vunpack.c.h.bf16 %v919
  %v953 = vunpack.c.l.bf16 %v920
  %v954 = vunpack.c.h.bf16 %v920
  %v955 = vunpack.c.l.bf16 %v921
  %v956 = vunpack.c.h.bf16 %v921
  %v957 = vunpack.c.l.bf16 %v922
  %v958 = vunpack.c.h.bf16 %v922
  %v959 = vunpack.c.l.bf16 %v923
  %v960 = vunpack.c.h.bf16 %v923
  %v961 = vunpack.c.l.bf16 %v924
  %v962 = vunpack.c.h.bf16 %v924
  %v963 = vunpack.c.l.bf16 %v925
  %v964 = vunpack.c.h.bf16 %v925
  %v965 = vunpack.c.l.bf16 %v926
  %v966 = vunpack.c.h.bf16 %v926
  %v967 = vunpack.c.l.bf16 %v927
  %v968 = vunpack.c.h.bf16 %v927
  %v969 = vunpack.c.l.bf16 %v928
  %v970 = vunpack.c.h.bf16 %v928
  %v971 = vunpack.c.l.bf16 %v929
  %v972 = vunpack.c.h.bf16 %v929
  %v973 = vunpack.c.l.bf16 %v930
  %v974 = vunpack.c.h.bf16 %v930
  %v975 = vunpack.c.l.bf16 %v931
  %v976 = vunpack.c.h.bf16 %v931
  %v977 = vunpack.c.l.bf16 %v932
  %v978 = vunpack.c.h.bf16 %v932
  %v979 = vunpack.c.l.bf16 %v933
  %v980 = vunpack.c.h.bf16 %v933
  %v981 = vunpack.c.l.bf16 %v934
  %v982 = vunpack.c.h.bf16 %v934
  %v983 = vunpack.c.l.bf16 %v935
  %v984 = vunpack.c.h.bf16 %v935
  %v985 = vunpack.c.l.bf16 %v936
  %v986 = vunpack.c.h.bf16 %v936
  %v987 = vunpack.c.l.bf16 %v937
  %v988 = vunpack.c.h.bf16 %v937
  %v989 = vunpack.c.l.bf16 %v938
  %v990 = vunpack.c.h.bf16 %v938
  %v991 = vunpack.c.l.bf16 %v939
  %v992 = vunpack.c.h.bf16 %v939
  %v993 = vunpack.c.l.bf16 %v940
  %v994 = vunpack.c.h.bf16 %v940
  %v995 = vunpack.c.l.bf16 %v941
  %v996 = vunpack.c.h.bf16 %v941
  %v997 = vunpack.c.l.bf16 %v942
  %v998 = vunpack.c.h.bf16 %v942
  %v999 = vunpack.c.l.bf16 %v943
  %v1000 = vunpack.c.h.bf16 %v943
  %v1001 = vunpack.c.l.bf16 %v944
  %v1002 = vunpack.c.h.bf16 %v944
  %v1003 = vunpack.c.l.bf16 %v945
  %v1004 = vunpack.c.h.bf16 %v945
  %v1005 = vunpack.c.l.bf16 %v946
  %v1006 = vunpack.c.h.bf16 %v946
  %v1007 = vunpack.c.l.bf16 %v947
  %v1008 = vunpack.c.h.bf16 %v947
  %v1009 = vunpack.c.l.bf16 %v948
  %v1010 = vunpack.c.h.bf16 %v948
  %v1011 = vunpack.c.l.bf16 %v949
  %v1012 = vunpack.c.h.bf16 %v949
  %v1013 = vunpack.c.l.bf16 %v950
  %v1014 = vunpack.c.h.bf16 %v950
  %1015 = vmatprep.subr.mxu0 0.0
  %1016 = vmatpush1.msra.mxu0 %v674
  %1017 = vmatprep.subr.mxu0 0.0
  %1018 = vmatpush1.msra.mxu0 %v670
  %1019 = vmatprep.subr.mxu0 0.0
  %1020 = vmatpush1.msra.mxu0 %v664
  %1021 = vmatprep.subr.mxu0 0.0
  %1022 = vmatpush1.msra.mxu0 %v660
  %1023 = vmatprep.subr.mxu0 0.0
  %1024 = vmatpush1.msra.mxu0 %v654
  %1025 = vmatprep.subr.mxu0 0.0
  %1026 = vmatpush1.msra.mxu0 %v650
  %1027 = vmatprep.subr.mxu0 0.0
  %1028 = vmatpush1.msra.mxu0 %v644
  %1029 = vmatprep.subr.mxu0 0.0
  %1030 = vmatpush1.msra.mxu0 %v640
  %1031 = vmatprep.subr.mxu0 0.0
  %1032 = vmatpush1.msra.mxu0 %v634
  %1033 = vmatprep.subr.mxu0 0.0
  %1034 = vmatpush1.msra.mxu0 %v630
  %1035 = vmatprep.subr.mxu0 0.0
  %1036 = vmatpush1.msra.mxu0 %v624
  %1037 = vmatprep.subr.mxu0 0.0
  %1038 = vmatpush1.msra.mxu0 %v620
  %1039 = vmatprep.subr.mxu0 0.0
  %1040 = vmatpush1.msra.mxu0 %v614
  %1041 = vmatprep.subr.mxu0 0.0
  %1042 = vmatpush1.msra.mxu0 %v610
  %1043 = vmatprep.subr.mxu0 0.0
  %1044 = vmatpush1.msra.mxu0 %v604
  %1045 = vmatprep.subr.mxu0 0.0
  %1046 = vmatpush1.msra.mxu0 %v600
  %1047 = vmatprep.subr.mxu0 0.0
  %1048 = vmatpush2.msra.mxu0 %v754
  %1049 = vmatprep.subr.mxu0 0.0
  %1050 = vmatpush2.msra.mxu0 %v750
  %1051 = vmatprep.subr.mxu0 0.0
  %1052 = vmatpush2.msra.mxu0 %v744
  %1053 = vmatprep.subr.mxu0 0.0
  %1054 = vmatpush2.msra.mxu0 %v740
  %1055 = vmatprep.subr.mxu0 0.0
  %1056 = vmatpush2.msra.mxu0 %v734
  %1057 = vmatprep.subr.mxu0 0.0
  %1058 = vmatpush2.msra.mxu0 %v730
  %1059 = vmatprep.subr.mxu0 0.0
  %1060 = vmatpush2.msra.mxu0 %v724
  %1061 = vmatprep.subr.mxu0 0.0
  %1062 = vmatpush2.msra.mxu0 %v720
  %1063 = vmatprep.subr.mxu0 0.0
  %1064 = vmatpush2.msra.mxu0 %v714
  %1065 = vmatprep.subr.mxu0 0.0
  %1066 = vmatpush2.msra.mxu0 %v710
  %1067 = vmatprep.subr.mxu0 0.0
  %1068 = vmatpush2.msra.mxu0 %v704
  %1069 = vmatprep.subr.mxu0 0.0
  %1070 = vmatpush2.msra.mxu0 %v700
  %1071 = vmatprep.subr.mxu0 0.0
  %1072 = vmatpush2.msra.mxu0 %v694
  %1073 = vmatprep.subr.mxu0 0.0
  %1074 = vmatpush2.msra.mxu0 %v690
  %1075 = vmatprep.subr.mxu0 0.0
  %1076 = vmatpush2.msra.mxu0 %v684
  %1077 = vmatprep.subr.mxu0 0.0
  %1078 = vmatpush2.msra.mxu0 %v680
  %1079 = vmatprep.mubr.f32.mxu0 %v952
  %1080 = vmatmul.mubr.f32.gmra.mxu0 %v951
  %v1081 = vpop.f32.mrf.mxu0
  %v1082 = vadd.f32 0.0, %v1081
  %v1083 = vpop.f32.mrf.mxu0
  %1084 = vmatprep.mubr.f32.mxu0 %v954
  %1085 = vmatmul.mubr.f32.gmra.mxu0 %v953
  %v1086 = vpop.f32.mrf.mxu0
  %v1087 = vadd.f32 0.0, %v1086
  %v1088 = vpop.f32.mrf.mxu0
  %1089 = vmatprep.mubr.f32.mxu0 %v956
  %1090 = vmatmul.mubr.f32.gmra.mxu0 %v955
  %v1091 = vpop.f32.mrf.mxu0
  %v1092 = vadd.f32 0.0, %v1091
  %v1093 = vpop.f32.mrf.mxu0
  %1094 = vmatprep.mubr.f32.mxu0 %v958
  %1095 = vmatmul.mubr.f32.gmra.mxu0 %v957
  %v1096 = vpop.f32.mrf.mxu0
  %v1097 = vadd.f32 0.0, %v1096
  %v1098 = vpop.f32.mrf.mxu0
  %1099 = vmatprep.mubr.f32.mxu0 %v960
  %1100 = vmatmul.mubr.f32.gmra.mxu0 %v959
  %v1101 = vpop.f32.mrf.mxu0
  %v1102 = vadd.f32 0.0, %v1101
  %v1103 = vpop.f32.mrf.mxu0
  %1104 = vmatprep.mubr.f32.mxu0 %v962
  %1105 = vmatmul.mubr.f32.gmra.mxu0 %v961
  %v1106 = vpop.f32.mrf.mxu0
  %v1107 = vadd.f32 0.0, %v1106
  %v1108 = vpop.f32.mrf.mxu0
  %1109 = vmatprep.mubr.f32.mxu0 %v964
  %1110 = vmatmul.mubr.f32.gmra.mxu0 %v963
  %v1111 = vpop.f32.mrf.mxu0
  %v1112 = vadd.f32 0.0, %v1111
  %v1113 = vpop.f32.mrf.mxu0
  %1114 = vmatprep.mubr.f32.mxu0 %v966
  %1115 = vmatmul.mubr.f32.gmra.mxu0 %v965
  %v1116 = vpop.f32.mrf.mxu0
  %v1117 = vadd.f32 0.0, %v1116
  %v1118 = vpop.f32.mrf.mxu0
  %1119 = vmatprep.mubr.f32.mxu0 %v968
  %1120 = vmatmul.mubr.f32.gmra.mxu0 %v967
  %v1121 = vpop.f32.mrf.mxu0
  %v1122 = vadd.f32 0.0, %v1121
  %v1123 = vpop.f32.mrf.mxu0
  %1124 = vmatprep.mubr.f32.mxu0 %v970
  %1125 = vmatmul.mubr.f32.gmra.mxu0 %v969
  %v1126 = vpop.f32.mrf.mxu0
  %v1127 = vadd.f32 0.0, %v1126
  %v1128 = vpop.f32.mrf.mxu0
  %1129 = vmatprep.mubr.f32.mxu0 %v972
  %1130 = vmatmul.mubr.f32.gmra.mxu0 %v971
  %v1131 = vpop.f32.mrf.mxu0
  %v1132 = vadd.f32 0.0, %v1131
  %v1133 = vpop.f32.mrf.mxu0
  %1134 = vmatprep.mubr.f32.mxu0 %v974
  %1135 = vmatmul.mubr.f32.gmra.mxu0 %v973
  %v1136 = vpop.f32.mrf.mxu0
  %v1137 = vadd.f32 0.0, %v1136
  %v1138 = vpop.f32.mrf.mxu0
  %1139 = vmatprep.mubr.f32.mxu0 %v976
  %1140 = vmatmul.mubr.f32.gmra.mxu0 %v975
  %v1141 = vpop.f32.mrf.mxu0
  %v1142 = vadd.f32 0.0, %v1141
  %v1143 = vpop.f32.mrf.mxu0
  %1144 = vmatprep.mubr.f32.mxu0 %v978
  %1145 = vmatmul.mubr.f32.gmra.mxu0 %v977
  %v1146 = vpop.f32.mrf.mxu0
  %v1147 = vadd.f32 0.0, %v1146
  %v1148 = vpop.f32.mrf.mxu0
  %1149 = vmatprep.mubr.f32.mxu0 %v980
  %1150 = vmatmul.mubr.f32.gmra.mxu0 %v979
  %v1151 = vpop.f32.mrf.mxu0
  %v1152 = vadd.f32 0.0, %v1151
  %v1153 = vpop.f32.mrf.mxu0
  %1154 = vmatprep.mubr.f32.mxu0 %v982
  %1155 = vmatmul.mubr.f32.gmra.mxu0 %v981
  %v1156 = vpop.f32.mrf.mxu0
  %v1157 = vadd.f32 0.0, %v1156
  %v1158 = vpop.f32.mrf.mxu0
  %1159 = vmatprep.mubr.f32.mxu0 %v984
  %1160 = vmatmul.mubr.f32.gmra.mxu0 %v983
  %v1161 = vpop.f32.mrf.mxu0
  %v1162 = vadd.f32 0.0, %v1161
  %v1163 = vpop.f32.mrf.mxu0
  %1164 = vmatprep.mubr.f32.mxu0 %v986
  %1165 = vmatmul.mubr.f32.gmra.mxu0 %v985
  %v1166 = vpop.f32.mrf.mxu0
  %v1167 = vadd.f32 0.0, %v1166
  %v1168 = vpop.f32.mrf.mxu0
  %1169 = vmatprep.mubr.f32.mxu0 %v988
  %1170 = vmatmul.mubr.f32.gmra.mxu0 %v987
  %v1171 = vpop.f32.mrf.mxu0
  %v1172 = vadd.f32 0.0, %v1171
  %v1173 = vpop.f32.mrf.mxu0
  %1174 = vmatprep.mubr.f32.mxu0 %v990
  %1175 = vmatmul.mubr.f32.gmra.mxu0 %v989
  %v1176 = vpop.f32.mrf.mxu0
  %v1177 = vadd.f32 0.0, %v1176
  %v1178 = vpop.f32.mrf.mxu0
  %1179 = vmatprep.mubr.f32.mxu0 %v992
  %1180 = vmatmul.mubr.f32.gmra.mxu0 %v991
  %v1181 = vpop.f32.mrf.mxu0
  %v1182 = vadd.f32 0.0, %v1181
  %v1183 = vpop.f32.mrf.mxu0
  %1184 = vmatprep.mubr.f32.mxu0 %v994
  %1185 = vmatmul.mubr.f32.gmra.mxu0 %v993
  %v1186 = vpop.f32.mrf.mxu0
  %v1187 = vadd.f32 0.0, %v1186
  %v1188 = vpop.f32.mrf.mxu0
  %1189 = vmatprep.mubr.f32.mxu0 %v996
  %1190 = vmatmul.mubr.f32.gmra.mxu0 %v995
  %v1191 = vpop.f32.mrf.mxu0
  %v1192 = vadd.f32 0.0, %v1191
  %v1193 = vpop.f32.mrf.mxu0
  %1194 = vmatprep.mubr.f32.mxu0 %v998
  %1195 = vmatmul.mubr.f32.gmra.mxu0 %v997
  %v1196 = vpop.f32.mrf.mxu0
  %v1197 = vadd.f32 0.0, %v1196
  %v1198 = vpop.f32.mrf.mxu0
  %1199 = vmatprep.mubr.f32.mxu0 %v1000
  %1200 = vmatmul.mubr.f32.gmra.mxu0 %v999
  %v1201 = vpop.f32.mrf.mxu0
  %v1202 = vadd.f32 0.0, %v1201
  %v1203 = vpop.f32.mrf.mxu0
  %1204 = vmatprep.mubr.f32.mxu0 %v1002
  %1205 = vmatmul.mubr.f32.gmra.mxu0 %v1001
  %v1206 = vpop.f32.mrf.mxu0
  %v1207 = vadd.f32 0.0, %v1206
  %v1208 = vpop.f32.mrf.mxu0
  %1209 = vmatprep.mubr.f32.mxu0 %v1004
  %1210 = vmatmul.mubr.f32.gmra.mxu0 %v1003
  %v1211 = vpop.f32.mrf.mxu0
  %v1212 = vadd.f32 0.0, %v1211
  %v1213 = vpop.f32.mrf.mxu0
  %1214 = vmatprep.mubr.f32.mxu0 %v1006
  %1215 = vmatmul.mubr.f32.gmra.mxu0 %v1005
  %v1216 = vpop.f32.mrf.mxu0
  %v1217 = vadd.f32 0.0, %v1216
  %v1218 = vpop.f32.mrf.mxu0
  %1219 = vmatprep.mubr.f32.mxu0 %v1008
  %1220 = vmatmul.mubr.f32.gmra.mxu0 %v1007
  %v1221 = vpop.f32.mrf.mxu0
  %v1222 = vadd.f32 0.0, %v1221
  %v1223 = vpop.f32.mrf.mxu0
  %1224 = vmatprep.mubr.f32.mxu0 %v1010
  %1225 = vmatmul.mubr.f32.gmra.mxu0 %v1009
  %v1226 = vpop.f32.mrf.mxu0
  %v1227 = vadd.f32 0.0, %v1226
  %v1228 = vpop.f32.mrf.mxu0
  %1229 = vmatprep.mubr.f32.mxu0 %v1012
  %1230 = vmatmul.mubr.f32.gmra.mxu0 %v1011
  %v1231 = vpop.f32.mrf.mxu0
  %v1232 = vadd.f32 0.0, %v1231
  %v1233 = vpop.f32.mrf.mxu0
  %1234 = vmatprep.mubr.f32.mxu0 %v1014
  %1235 = vmatmul.mubr.f32.gmra.mxu0 %v1013
  %v1236 = vpop.f32.mrf.mxu0
  %v1237 = vadd.f32 0.0, %v1236
  %v1238 = vpop.f32.mrf.mxu0
  %1239 = vdwg.mxu0
  %s1240 = scalar_lea.vmem %s2, 256
  %v1241 = vld [vmem:[%s1240] sm:$0xff]
  %v1242 = vld [vmem:[%s1240 + $0x8] sm:$0xff]
  %v1243 = vld [vmem:[%s1240 + $0x10] sm:$0xff]
  %v1244 = vld [vmem:[%s1240 + $0x18] sm:$0xff]
  %v1245 = vld [vmem:[%s1240 + $0x20] sm:$0xff]
  %v1246 = vld [vmem:[%s1240 + $0x28] sm:$0xff]
  %v1247 = vld [vmem:[%s1240 + $0x30] sm:$0xff]
  %v1248 = vld [vmem:[%s1240 + $0x38] sm:$0xff]
  %v1249 = vld [vmem:[%s1240 + $0x40] sm:$0xff]
  %v1250 = vld [vmem:[%s1240 + $0x48] sm:$0xff]
  %v1251 = vld [vmem:[%s1240 + $0x50] sm:$0xff]
  %v1252 = vld [vmem:[%s1240 + $0x58] sm:$0xff]
  %v1253 = vld [vmem:[%s1240 + $0x60] sm:$0xff]
  %v1254 = vld [vmem:[%s1240 + $0x68] sm:$0xff]
  %v1255 = vld [vmem:[%s1240 + $0x70] sm:$0xff]
  %v1256 = vld [vmem:[%s1240 + $0x78] sm:$0xff]
  %v1257 = vld [vmem:[%s1240 + $0x80] sm:$0xff]
  %v1258 = vld [vmem:[%s1240 + $0x88] sm:$0xff]
  %v1259 = vld [vmem:[%s1240 + $0x90] sm:$0xff]
  %v1260 = vld [vmem:[%s1240 + $0x98] sm:$0xff]
  %v1261 = vld [vmem:[%s1240 + $0xa0] sm:$0xff]
  %v1262 = vld [vmem:[%s1240 + $0xa8] sm:$0xff]
  %v1263 = vld [vmem:[%s1240 + $0xb0] sm:$0xff]
  %v1264 = vld [vmem:[%s1240 + $0xb8] sm:$0xff]
  %v1265 = vld [vmem:[%s1240 + $0xc0] sm:$0xff]
  %v1266 = vld [vmem:[%s1240 + $0xc8] sm:$0xff]
  %v1267 = vld [vmem:[%s1240 + $0xd0] sm:$0xff]
  %v1268 = vld [vmem:[%s1240 + $0xd8] sm:$0xff]
  %v1269 = vld [vmem:[%s1240 + $0xe0] sm:$0xff]
  %v1270 = vld [vmem:[%s1240 + $0xe8] sm:$0xff]
  %v1271 = vld [vmem:[%s1240 + $0xf0] sm:$0xff]
  %v1272 = vld [vmem:[%s1240 + $0xf8] sm:$0xff]
  %v1273 = vunpack.c.l.bf16 %v1241
  %v1274 = vunpack.c.h.bf16 %v1241
  %v1275 = vunpack.c.l.bf16 %v1242
  %v1276 = vunpack.c.h.bf16 %v1242
  %v1277 = vunpack.c.l.bf16 %v1243
  %v1278 = vunpack.c.h.bf16 %v1243
  %v1279 = vunpack.c.l.bf16 %v1244
  %v1280 = vunpack.c.h.bf16 %v1244
  %v1281 = vunpack.c.l.bf16 %v1245
  %v1282 = vunpack.c.h.bf16 %v1245
  %v1283 = vunpack.c.l.bf16 %v1246
  %v1284 = vunpack.c.h.bf16 %v1246
  %v1285 = vunpack.c.l.bf16 %v1247
  %v1286 = vunpack.c.h.bf16 %v1247
  %v1287 = vunpack.c.l.bf16 %v1248
  %v1288 = vunpack.c.h.bf16 %v1248
  %v1289 = vunpack.c.l.bf16 %v1249
  %v1290 = vunpack.c.h.bf16 %v1249
  %v1291 = vunpack.c.l.bf16 %v1250
  %v1292 = vunpack.c.h.bf16 %v1250
  %v1293 = vunpack.c.l.bf16 %v1251
  %v1294 = vunpack.c.h.bf16 %v1251
  %v1295 = vunpack.c.l.bf16 %v1252
  %v1296 = vunpack.c.h.bf16 %v1252
  %v1297 = vunpack.c.l.bf16 %v1253
  %v1298 = vunpack.c.h.bf16 %v1253
  %v1299 = vunpack.c.l.bf16 %v1254
  %v1300 = vunpack.c.h.bf16 %v1254
  %v1301 = vunpack.c.l.bf16 %v1255
  %v1302 = vunpack.c.h.bf16 %v1255
  %v1303 = vunpack.c.l.bf16 %v1256
  %v1304 = vunpack.c.h.bf16 %v1256
  %v1305 = vunpack.c.l.bf16 %v1257
  %v1306 = vunpack.c.h.bf16 %v1257
  %v1307 = vunpack.c.l.bf16 %v1258
  %v1308 = vunpack.c.h.bf16 %v1258
  %v1309 = vunpack.c.l.bf16 %v1259
  %v1310 = vunpack.c.h.bf16 %v1259
  %v1311 = vunpack.c.l.bf16 %v1260
  %v1312 = vunpack.c.h.bf16 %v1260
  %v1313 = vunpack.c.l.bf16 %v1261
  %v1314 = vunpack.c.h.bf16 %v1261
  %v1315 = vunpack.c.l.bf16 %v1262
  %v1316 = vunpack.c.h.bf16 %v1262
  %v1317 = vunpack.c.l.bf16 %v1263
  %v1318 = vunpack.c.h.bf16 %v1263
  %v1319 = vunpack.c.l.bf16 %v1264
  %v1320 = vunpack.c.h.bf16 %v1264
  %v1321 = vunpack.c.l.bf16 %v1265
  %v1322 = vunpack.c.h.bf16 %v1265
  %v1323 = vunpack.c.l.bf16 %v1266
  %v1324 = vunpack.c.h.bf16 %v1266
  %v1325 = vunpack.c.l.bf16 %v1267
  %v1326 = vunpack.c.h.bf16 %v1267
  %v1327 = vunpack.c.l.bf16 %v1268
  %v1328 = vunpack.c.h.bf16 %v1268
  %v1329 = vunpack.c.l.bf16 %v1269
  %v1330 = vunpack.c.h.bf16 %v1269
  %v1331 = vunpack.c.l.bf16 %v1270
  %v1332 = vunpack.c.h.bf16 %v1270
  %v1333 = vunpack.c.l.bf16 %v1271
  %v1334 = vunpack.c.h.bf16 %v1271
  %v1335 = vunpack.c.l.bf16 %v1272
  %v1336 = vunpack.c.h.bf16 %v1272
  %1337 = vmatprep.subr.mxu0 0.0
  %1338 = vmatpush1.msra.mxu0 %v676
  %1339 = vmatprep.subr.mxu0 0.0
  %1340 = vmatpush1.msra.mxu0 %v672
  %1341 = vmatprep.subr.mxu0 0.0
  %1342 = vmatpush1.msra.mxu0 %v666
  %1343 = vmatprep.subr.mxu0 0.0
  %1344 = vmatpush1.msra.mxu0 %v662
  %1345 = vmatprep.subr.mxu0 0.0
  %1346 = vmatpush1.msra.mxu0 %v656
  %1347 = vmatprep.subr.mxu0 0.0
  %1348 = vmatpush1.msra.mxu0 %v652
  %1349 = vmatprep.subr.mxu0 0.0
  %1350 = vmatpush1.msra.mxu0 %v646
  %1351 = vmatprep.subr.mxu0 0.0
  %1352 = vmatpush1.msra.mxu0 %v642
  %1353 = vmatprep.subr.mxu0 0.0
  %1354 = vmatpush1.msra.mxu0 %v636
  %1355 = vmatprep.subr.mxu0 0.0
  %1356 = vmatpush1.msra.mxu0 %v632
  %1357 = vmatprep.subr.mxu0 0.0
  %1358 = vmatpush1.msra.mxu0 %v626
  %1359 = vmatprep.subr.mxu0 0.0
  %1360 = vmatpush1.msra.mxu0 %v622
  %1361 = vmatprep.subr.mxu0 0.0
  %1362 = vmatpush1.msra.mxu0 %v616
  %1363 = vmatprep.subr.mxu0 0.0
  %1364 = vmatpush1.msra.mxu0 %v612
  %1365 = vmatprep.subr.mxu0 0.0
  %1366 = vmatpush1.msra.mxu0 %v606
  %1367 = vmatprep.subr.mxu0 0.0
  %1368 = vmatpush1.msra.mxu0 %v602
  %1369 = vmatprep.subr.mxu0 0.0
  %1370 = vmatpush2.msra.mxu0 %v756
  %1371 = vmatprep.subr.mxu0 0.0
  %1372 = vmatpush2.msra.mxu0 %v752
  %1373 = vmatprep.subr.mxu0 0.0
  %1374 = vmatpush2.msra.mxu0 %v746
  %1375 = vmatprep.subr.mxu0 0.0
  %1376 = vmatpush2.msra.mxu0 %v742
  %1377 = vmatprep.subr.mxu0 0.0
  %1378 = vmatpush2.msra.mxu0 %v736
  %1379 = vmatprep.subr.mxu0 0.0
  %1380 = vmatpush2.msra.mxu0 %v732
  %1381 = vmatprep.subr.mxu0 0.0
  %1382 = vmatpush2.msra.mxu0 %v726
  %1383 = vmatprep.subr.mxu0 0.0
  %1384 = vmatpush2.msra.mxu0 %v722
  %1385 = vmatprep.subr.mxu0 0.0
  %1386 = vmatpush2.msra.mxu0 %v716
  %1387 = vmatprep.subr.mxu0 0.0
  %1388 = vmatpush2.msra.mxu0 %v712
  %1389 = vmatprep.subr.mxu0 0.0
  %1390 = vmatpush2.msra.mxu0 %v706
  %1391 = vmatprep.subr.mxu0 0.0
  %1392 = vmatpush2.msra.mxu0 %v702
  %1393 = vmatprep.subr.mxu0 0.0
  %1394 = vmatpush2.msra.mxu0 %v696
  %1395 = vmatprep.subr.mxu0 0.0
  %1396 = vmatpush2.msra.mxu0 %v692
  %1397 = vmatprep.subr.mxu0 0.0
  %1398 = vmatpush2.msra.mxu0 %v686
  %1399 = vmatprep.subr.mxu0 0.0
  %1400 = vmatpush2.msra.mxu0 %v682
  %1401 = vmatprep.mubr.f32.mxu0 %v1274
  %1402 = vmatmul.mubr.f32.gmra.mxu0 %v1273
  %v1403 = vpop.f32.mrf.mxu0
  %v1404 = vadd.f32 0.0, %v1403
  %v1405 = vpop.f32.mrf.mxu0
  %1406 = vmatprep.mubr.f32.mxu0 %v1276
  %1407 = vmatmul.mubr.f32.gmra.mxu0 %v1275
  %v1408 = vpop.f32.mrf.mxu0
  %v1409 = vadd.f32 0.0, %v1408
  %v1410 = vpop.f32.mrf.mxu0
  %1411 = vmatprep.mubr.f32.mxu0 %v1278
  %1412 = vmatmul.mubr.f32.gmra.mxu0 %v1277
  %v1413 = vpop.f32.mrf.mxu0
  %v1414 = vadd.f32 0.0, %v1413
  %v1415 = vpop.f32.mrf.mxu0
  %1416 = vmatprep.mubr.f32.mxu0 %v1280
  %1417 = vmatmul.mubr.f32.gmra.mxu0 %v1279
  %v1418 = vpop.f32.mrf.mxu0
  %v1419 = vadd.f32 0.0, %v1418
  %v1420 = vpop.f32.mrf.mxu0
  %1421 = vmatprep.mubr.f32.mxu0 %v1282
  %1422 = vmatmul.mubr.f32.gmra.mxu0 %v1281
  %v1423 = vpop.f32.mrf.mxu0
  %v1424 = vadd.f32 0.0, %v1423
  %v1425 = vpop.f32.mrf.mxu0
  %1426 = vmatprep.mubr.f32.mxu0 %v1284
  %1427 = vmatmul.mubr.f32.gmra.mxu0 %v1283
  %v1428 = vpop.f32.mrf.mxu0
  %v1429 = vadd.f32 0.0, %v1428
  %v1430 = vpop.f32.mrf.mxu0
  %1431 = vmatprep.mubr.f32.mxu0 %v1286
  %1432 = vmatmul.mubr.f32.gmra.mxu0 %v1285
  %v1433 = vpop.f32.mrf.mxu0
  %v1434 = vadd.f32 0.0, %v1433
  %v1435 = vpop.f32.mrf.mxu0
  %1436 = vmatprep.mubr.f32.mxu0 %v1288
  %1437 = vmatmul.mubr.f32.gmra.mxu0 %v1287
  %v1438 = vpop.f32.mrf.mxu0
  %v1439 = vadd.f32 0.0, %v1438
  %v1440 = vpop.f32.mrf.mxu0
  %1441 = vmatprep.mubr.f32.mxu0 %v1290
  %1442 = vmatmul.mubr.f32.gmra.mxu0 %v1289
  %v1443 = vpop.f32.mrf.mxu0
  %v1444 = vadd.f32 0.0, %v1443
  %v1445 = vpop.f32.mrf.mxu0
  %1446 = vmatprep.mubr.f32.mxu0 %v1292
  %1447 = vmatmul.mubr.f32.gmra.mxu0 %v1291
  %v1448 = vpop.f32.mrf.mxu0
  %v1449 = vadd.f32 0.0, %v1448
  %v1450 = vpop.f32.mrf.mxu0
  %1451 = vmatprep.mubr.f32.mxu0 %v1294
  %1452 = vmatmul.mubr.f32.gmra.mxu0 %v1293
  %v1453 = vpop.f32.mrf.mxu0
  %v1454 = vadd.f32 0.0, %v1453
  %v1455 = vpop.f32.mrf.mxu0
  %1456 = vmatprep.mubr.f32.mxu0 %v1296
  %1457 = vmatmul.mubr.f32.gmra.mxu0 %v1295
  %v1458 = vpop.f32.mrf.mxu0
  %v1459 = vadd.f32 0.0, %v1458
  %v1460 = vpop.f32.mrf.mxu0
  %1461 = vmatprep.mubr.f32.mxu0 %v1298
  %1462 = vmatmul.mubr.f32.gmra.mxu0 %v1297
  %v1463 = vpop.f32.mrf.mxu0
  %v1464 = vadd.f32 0.0, %v1463
  %v1465 = vpop.f32.mrf.mxu0
  %1466 = vmatprep.mubr.f32.mxu0 %v1300
  %1467 = vmatmul.mubr.f32.gmra.mxu0 %v1299
  %v1468 = vpop.f32.mrf.mxu0
  %v1469 = vadd.f32 0.0, %v1468
  %v1470 = vpop.f32.mrf.mxu0
  %1471 = vmatprep.mubr.f32.mxu0 %v1302
  %1472 = vmatmul.mubr.f32.gmra.mxu0 %v1301
  %v1473 = vpop.f32.mrf.mxu0
  %v1474 = vadd.f32 0.0, %v1473
  %v1475 = vpop.f32.mrf.mxu0
  %1476 = vmatprep.mubr.f32.mxu0 %v1304
  %1477 = vmatmul.mubr.f32.gmra.mxu0 %v1303
  %v1478 = vpop.f32.mrf.mxu0
  %v1479 = vadd.f32 0.0, %v1478
  %v1480 = vpop.f32.mrf.mxu0
  %1481 = vmatprep.mubr.f32.mxu0 %v1306
  %1482 = vmatmul.mubr.f32.gmra.mxu0 %v1305
  %v1483 = vpop.f32.mrf.mxu0
  %v1484 = vadd.f32 0.0, %v1483
  %v1485 = vpop.f32.mrf.mxu0
  %1486 = vmatprep.mubr.f32.mxu0 %v1308
  %1487 = vmatmul.mubr.f32.gmra.mxu0 %v1307
  %v1488 = vpop.f32.mrf.mxu0
  %v1489 = vadd.f32 0.0, %v1488
  %v1490 = vpop.f32.mrf.mxu0
  %1491 = vmatprep.mubr.f32.mxu0 %v1310
  %1492 = vmatmul.mubr.f32.gmra.mxu0 %v1309
  %v1493 = vpop.f32.mrf.mxu0
  %v1494 = vadd.f32 0.0, %v1493
  %v1495 = vpop.f32.mrf.mxu0
  %1496 = vmatprep.mubr.f32.mxu0 %v1312
  %1497 = vmatmul.mubr.f32.gmra.mxu0 %v1311
  %v1498 = vpop.f32.mrf.mxu0
  %v1499 = vadd.f32 0.0, %v1498
  %v1500 = vpop.f32.mrf.mxu0
  %1501 = vmatprep.mubr.f32.mxu0 %v1314
  %1502 = vmatmul.mubr.f32.gmra.mxu0 %v1313
  %v1503 = vpop.f32.mrf.mxu0
  %v1504 = vadd.f32 0.0, %v1503
  %v1505 = vpop.f32.mrf.mxu0
  %1506 = vmatprep.mubr.f32.mxu0 %v1316
  %1507 = vmatmul.mubr.f32.gmra.mxu0 %v1315
  %v1508 = vpop.f32.mrf.mxu0
  %v1509 = vadd.f32 0.0, %v1508
  %v1510 = vpop.f32.mrf.mxu0
  %1511 = vmatprep.mubr.f32.mxu0 %v1318
  %1512 = vmatmul.mubr.f32.gmra.mxu0 %v1317
  %v1513 = vpop.f32.mrf.mxu0
  %v1514 = vadd.f32 0.0, %v1513
  %v1515 = vpop.f32.mrf.mxu0
  %1516 = vmatprep.mubr.f32.mxu0 %v1320
  %1517 = vmatmul.mubr.f32.gmra.mxu0 %v1319
  %v1518 = vpop.f32.mrf.mxu0
  %v1519 = vadd.f32 0.0, %v1518
  %v1520 = vpop.f32.mrf.mxu0
  %1521 = vmatprep.mubr.f32.mxu0 %v1322
  %1522 = vmatmul.mubr.f32.gmra.mxu0 %v1321
  %v1523 = vpop.f32.mrf.mxu0
  %v1524 = vadd.f32 0.0, %v1523
  %v1525 = vpop.f32.mrf.mxu0
  %1526 = vmatprep.mubr.f32.mxu0 %v1324
  %1527 = vmatmul.mubr.f32.gmra.mxu0 %v1323
  %v1528 = vpop.f32.mrf.mxu0
  %v1529 = vadd.f32 0.0, %v1528
  %v1530 = vpop.f32.mrf.mxu0
  %1531 = vmatprep.mubr.f32.mxu0 %v1326
  %1532 = vmatmul.mubr.f32.gmra.mxu0 %v1325
  %v1533 = vpop.f32.mrf.mxu0
  %v1534 = vadd.f32 0.0, %v1533
  %v1535 = vpop.f32.mrf.mxu0
  %1536 = vmatprep.mubr.f32.mxu0 %v1328
  %1537 = vmatmul.mubr.f32.gmra.mxu0 %v1327
  %v1538 = vpop.f32.mrf.mxu0
  %v1539 = vadd.f32 0.0, %v1538
  %v1540 = vpop.f32.mrf.mxu0
  %1541 = vmatprep.mubr.f32.mxu0 %v1330
  %1542 = vmatmul.mubr.f32.gmra.mxu0 %v1329
  %v1543 = vpop.f32.mrf.mxu0
  %v1544 = vadd.f32 0.0, %v1543
  %v1545 = vpop.f32.mrf.mxu0
  %1546 = vmatprep.mubr.f32.mxu0 %v1332
  %1547 = vmatmul.mubr.f32.gmra.mxu0 %v1331
  %v1548 = vpop.f32.mrf.mxu0
  %v1549 = vadd.f32 0.0, %v1548
  %v1550 = vpop.f32.mrf.mxu0
  %1551 = vmatprep.mubr.f32.mxu0 %v1334
  %1552 = vmatmul.mubr.f32.gmra.mxu0 %v1333
  %v1553 = vpop.f32.mrf.mxu0
  %v1554 = vadd.f32 0.0, %v1553
  %v1555 = vpop.f32.mrf.mxu0
  %1556 = vmatprep.mubr.f32.mxu0 %v1336
  %1557 = vmatmul.mubr.f32.gmra.mxu0 %v1335
  %v1558 = vpop.f32.mrf.mxu0
  %v1559 = vadd.f32 0.0, %v1558
  %v1560 = vpop.f32.mrf.mxu0
  %1561 = vdwg.mxu0
  %s1562 = scalar_lea.vmem %s2, 512
  %v1563 = vld [vmem:[%s1562] sm:$0xff]
  %v1564 = vld [vmem:[%s1562 + $0x8] sm:$0xff]
  %v1565 = vld [vmem:[%s1562 + $0x10] sm:$0xff]
  %v1566 = vld [vmem:[%s1562 + $0x18] sm:$0xff]
  %v1567 = vld [vmem:[%s1562 + $0x20] sm:$0xff]
  %v1568 = vld [vmem:[%s1562 + $0x28] sm:$0xff]
  %v1569 = vld [vmem:[%s1562 + $0x30] sm:$0xff]
  %v1570 = vld [vmem:[%s1562 + $0x38] sm:$0xff]
  %v1571 = vld [vmem:[%s1562 + $0x40] sm:$0xff]
  %v1572 = vld [vmem:[%s1562 + $0x48] sm:$0xff]
  %v1573 = vld [vmem:[%s1562 + $0x50] sm:$0xff]
  %v1574 = vld [vmem:[%s1562 + $0x58] sm:$0xff]
  %v1575 = vld [vmem:[%s1562 + $0x60] sm:$0xff]
  %v1576 = vld [vmem:[%s1562 + $0x68] sm:$0xff]
  %v1577 = vld [vmem:[%s1562 + $0x70] sm:$0xff]
  %v1578 = vld [vmem:[%s1562 + $0x78] sm:$0xff]
  %v1579 = vld [vmem:[%s1562 + $0x80] sm:$0xff]
  %v1580 = vld [vmem:[%s1562 + $0x88] sm:$0xff]
  %v1581 = vld [vmem:[%s1562 + $0x90] sm:$0xff]
  %v1582 = vld [vmem:[%s1562 + $0x98] sm:$0xff]
  %v1583 = vld [vmem:[%s1562 + $0xa0] sm:$0xff]
  %v1584 = vld [vmem:[%s1562 + $0xa8] sm:$0xff]
  %v1585 = vld [vmem:[%s1562 + $0xb0] sm:$0xff]
  %v1586 = vld [vmem:[%s1562 + $0xb8] sm:$0xff]
  %v1587 = vld [vmem:[%s1562 + $0xc0] sm:$0xff]
  %v1588 = vld [vmem:[%s1562 + $0xc8] sm:$0xff]
  %v1589 = vld [vmem:[%s1562 + $0xd0] sm:$0xff]
  %v1590 = vld [vmem:[%s1562 + $0xd8] sm:$0xff]
  %v1591 = vld [vmem:[%s1562 + $0xe0] sm:$0xff]
  %v1592 = vld [vmem:[%s1562 + $0xe8] sm:$0xff]
  %v1593 = vld [vmem:[%s1562 + $0xf0] sm:$0xff]
  %v1594 = vld [vmem:[%s1562 + $0xf8] sm:$0xff]
  %v1595 = vunpack.c.l.bf16 %v1563
  %v1596 = vunpack.c.h.bf16 %v1563
  %v1597 = vunpack.c.l.bf16 %v1564
  %v1598 = vunpack.c.h.bf16 %v1564
  %v1599 = vunpack.c.l.bf16 %v1565
  %v1600 = vunpack.c.h.bf16 %v1565
  %v1601 = vunpack.c.l.bf16 %v1566
  %v1602 = vunpack.c.h.bf16 %v1566
  %v1603 = vunpack.c.l.bf16 %v1567
  %v1604 = vunpack.c.h.bf16 %v1567
  %v1605 = vunpack.c.l.bf16 %v1568
  %v1606 = vunpack.c.h.bf16 %v1568
  %v1607 = vunpack.c.l.bf16 %v1569
  %v1608 = vunpack.c.h.bf16 %v1569
  %v1609 = vunpack.c.l.bf16 %v1570
  %v1610 = vunpack.c.h.bf16 %v1570
  %v1611 = vunpack.c.l.bf16 %v1571
  %v1612 = vunpack.c.h.bf16 %v1571
  %v1613 = vunpack.c.l.bf16 %v1572
  %v1614 = vunpack.c.h.bf16 %v1572
  %v1615 = vunpack.c.l.bf16 %v1573
  %v1616 = vunpack.c.h.bf16 %v1573
  %v1617 = vunpack.c.l.bf16 %v1574
  %v1618 = vunpack.c.h.bf16 %v1574
  %v1619 = vunpack.c.l.bf16 %v1575
  %v1620 = vunpack.c.h.bf16 %v1575
  %v1621 = vunpack.c.l.bf16 %v1576
  %v1622 = vunpack.c.h.bf16 %v1576
  %v1623 = vunpack.c.l.bf16 %v1577
  %v1624 = vunpack.c.h.bf16 %v1577
  %v1625 = vunpack.c.l.bf16 %v1578
  %v1626 = vunpack.c.h.bf16 %v1578
  %v1627 = vunpack.c.l.bf16 %v1579
  %v1628 = vunpack.c.h.bf16 %v1579
  %v1629 = vunpack.c.l.bf16 %v1580
  %v1630 = vunpack.c.h.bf16 %v1580
  %v1631 = vunpack.c.l.bf16 %v1581
  %v1632 = vunpack.c.h.bf16 %v1581
  %v1633 = vunpack.c.l.bf16 %v1582
  %v1634 = vunpack.c.h.bf16 %v1582
  %v1635 = vunpack.c.l.bf16 %v1583
  %v1636 = vunpack.c.h.bf16 %v1583
  %v1637 = vunpack.c.l.bf16 %v1584
  %v1638 = vunpack.c.h.bf16 %v1584
  %v1639 = vunpack.c.l.bf16 %v1585
  %v1640 = vunpack.c.h.bf16 %v1585
  %v1641 = vunpack.c.l.bf16 %v1586
  %v1642 = vunpack.c.h.bf16 %v1586
  %v1643 = vunpack.c.l.bf16 %v1587
  %v1644 = vunpack.c.h.bf16 %v1587
  %v1645 = vunpack.c.l.bf16 %v1588
  %v1646 = vunpack.c.h.bf16 %v1588
  %v1647 = vunpack.c.l.bf16 %v1589
  %v1648 = vunpack.c.h.bf16 %v1589
  %v1649 = vunpack.c.l.bf16 %v1590
  %v1650 = vunpack.c.h.bf16 %v1590
  %v1651 = vunpack.c.l.bf16 %v1591
  %v1652 = vunpack.c.h.bf16 %v1591
  %v1653 = vunpack.c.l.bf16 %v1592
  %v1654 = vunpack.c.h.bf16 %v1592
  %v1655 = vunpack.c.l.bf16 %v1593
  %v1656 = vunpack.c.h.bf16 %v1593
  %v1657 = vunpack.c.l.bf16 %v1594
  %v1658 = vunpack.c.h.bf16 %v1594
  %1659 = vmatprep.subr.mxu0 0.0
  %1660 = vmatpush1.msra.mxu0 %v852
  %1661 = vmatprep.subr.mxu0 0.0
  %1662 = vmatpush1.msra.mxu0 %v849
  %1663 = vmatprep.subr.mxu0 0.0
  %1664 = vmatpush1.msra.mxu0 %v844
  %1665 = vmatprep.subr.mxu0 0.0
  %1666 = vmatpush1.msra.mxu0 %v841
  %1667 = vmatprep.subr.mxu0 0.0
  %1668 = vmatpush1.msra.mxu0 %v836
  %1669 = vmatprep.subr.mxu0 0.0
  %1670 = vmatpush1.msra.mxu0 %v833
  %1671 = vmatprep.subr.mxu0 0.0
  %1672 = vmatpush1.msra.mxu0 %v828
  %1673 = vmatprep.subr.mxu0 0.0
  %1674 = vmatpush1.msra.mxu0 %v825
  %1675 = vmatprep.subr.mxu0 0.0
  %1676 = vmatpush1.msra.mxu0 %v820
  %1677 = vmatprep.subr.mxu0 0.0
  %1678 = vmatpush1.msra.mxu0 %v817
  %1679 = vmatprep.subr.mxu0 0.0
  %1680 = vmatpush1.msra.mxu0 %v812
  %1681 = vmatprep.subr.mxu0 0.0
  %1682 = vmatpush1.msra.mxu0 %v809
  %1683 = vmatprep.subr.mxu0 0.0
  %1684 = vmatpush1.msra.mxu0 %v804
  %1685 = vmatprep.subr.mxu0 0.0
  %1686 = vmatpush1.msra.mxu0 %v801
  %1687 = vmatprep.subr.mxu0 0.0
  %1688 = vmatpush1.msra.mxu0 %v796
  %1689 = vmatprep.subr.mxu0 0.0
  %1690 = vmatpush1.msra.mxu0 %v793
  %1691 = vmatprep.subr.mxu0 0.0
  %1692 = vmatpush2.msra.mxu0 %v916
  %1693 = vmatprep.subr.mxu0 0.0
  %1694 = vmatpush2.msra.mxu0 %v913
  %1695 = vmatprep.subr.mxu0 0.0
  %1696 = vmatpush2.msra.mxu0 %v908
  %1697 = vmatprep.subr.mxu0 0.0
  %1698 = vmatpush2.msra.mxu0 %v905
  %1699 = vmatprep.subr.mxu0 0.0
  %1700 = vmatpush2.msra.mxu0 %v900
  %1701 = vmatprep.subr.mxu0 0.0
  %1702 = vmatpush2.msra.mxu0 %v897
  %1703 = vmatprep.subr.mxu0 0.0
  %1704 = vmatpush2.msra.mxu0 %v892
  %1705 = vmatprep.subr.mxu0 0.0
  %1706 = vmatpush2.msra.mxu0 %v889
  %1707 = vmatprep.subr.mxu0 0.0
  %1708 = vmatpush2.msra.mxu0 %v884
  %1709 = vmatprep.subr.mxu0 0.0
  %1710 = vmatpush2.msra.mxu0 %v881
  %1711 = vmatprep.subr.mxu0 0.0
  %1712 = vmatpush2.msra.mxu0 %v876
  %1713 = vmatprep.subr.mxu0 0.0
  %1714 = vmatpush2.msra.mxu0 %v873
  %1715 = vmatprep.subr.mxu0 0.0
  %1716 = vmatpush2.msra.mxu0 %v868
  %1717 = vmatprep.subr.mxu0 0.0
  %1718 = vmatpush2.msra.mxu0 %v865
  %1719 = vmatprep.subr.mxu0 0.0
  %1720 = vmatpush2.msra.mxu0 %v860
  %1721 = vmatprep.subr.mxu0 0.0
  %1722 = vmatpush2.msra.mxu0 %v857
  %1723 = vmatprep.mubr.f32.mxu0 %v1596
  %1724 = vmatmul.mubr.f32.gmra.mxu0 %v1595
  %v1725 = vpop.f32.mrf.mxu0
  %v1726 = vadd.f32 0.0, %v1725
  %v1727 = vpop.f32.mrf.mxu0
  %1728 = vmatprep.mubr.f32.mxu0 %v1598
  %1729 = vmatmul.mubr.f32.gmra.mxu0 %v1597
  %v1730 = vpop.f32.mrf.mxu0
  %v1731 = vadd.f32 0.0, %v1730
  %v1732 = vpop.f32.mrf.mxu0
  %1733 = vmatprep.mubr.f32.mxu0 %v1600
  %1734 = vmatmul.mubr.f32.gmra.mxu0 %v1599
  %v1735 = vpop.f32.mrf.mxu0
  %v1736 = vadd.f32 0.0, %v1735
  %v1737 = vpop.f32.mrf.mxu0
  %1738 = vmatprep.mubr.f32.mxu0 %v1602
  %1739 = vmatmul.mubr.f32.gmra.mxu0 %v1601
  %v1740 = vpop.f32.mrf.mxu0
  %v1741 = vadd.f32 0.0, %v1740
  %v1742 = vpop.f32.mrf.mxu0
  %1743 = vmatprep.mubr.f32.mxu0 %v1604
  %1744 = vmatmul.mubr.f32.gmra.mxu0 %v1603
  %v1745 = vpop.f32.mrf.mxu0
  %v1746 = vadd.f32 0.0, %v1745
  %v1747 = vpop.f32.mrf.mxu0
  %1748 = vmatprep.mubr.f32.mxu0 %v1606
  %1749 = vmatmul.mubr.f32.gmra.mxu0 %v1605
  %v1750 = vpop.f32.mrf.mxu0
  %v1751 = vadd.f32 0.0, %v1750
  %v1752 = vpop.f32.mrf.mxu0
  %1753 = vmatprep.mubr.f32.mxu0 %v1608
  %1754 = vmatmul.mubr.f32.gmra.mxu0 %v1607
  %v1755 = vpop.f32.mrf.mxu0
  %v1756 = vadd.f32 0.0, %v1755
  %v1757 = vpop.f32.mrf.mxu0
  %1758 = vmatprep.mubr.f32.mxu0 %v1610
  %1759 = vmatmul.mubr.f32.gmra.mxu0 %v1609
  %v1760 = vpop.f32.mrf.mxu0
  %v1761 = vadd.f32 0.0, %v1760
  %v1762 = vpop.f32.mrf.mxu0
  %1763 = vmatprep.mubr.f32.mxu0 %v1612
  %1764 = vmatmul.mubr.f32.gmra.mxu0 %v1611
  %v1765 = vpop.f32.mrf.mxu0
  %v1766 = vadd.f32 0.0, %v1765
  %v1767 = vpop.f32.mrf.mxu0
  %1768 = vmatprep.mubr.f32.mxu0 %v1614
  %1769 = vmatmul.mubr.f32.gmra.mxu0 %v1613
  %v1770 = vpop.f32.mrf.mxu0
  %v1771 = vadd.f32 0.0, %v1770
  %v1772 = vpop.f32.mrf.mxu0
  %1773 = vmatprep.mubr.f32.mxu0 %v1616
  %1774 = vmatmul.mubr.f32.gmra.mxu0 %v1615
  %v1775 = vpop.f32.mrf.mxu0
  %v1776 = vadd.f32 0.0, %v1775
  %v1777 = vpop.f32.mrf.mxu0
  %1778 = vmatprep.mubr.f32.mxu0 %v1618
  %1779 = vmatmul.mubr.f32.gmra.mxu0 %v1617
  %v1780 = vpop.f32.mrf.mxu0
  %v1781 = vadd.f32 0.0, %v1780
  %v1782 = vpop.f32.mrf.mxu0
  %1783 = vmatprep.mubr.f32.mxu0 %v1620
  %1784 = vmatmul.mubr.f32.gmra.mxu0 %v1619
  %v1785 = vpop.f32.mrf.mxu0
  %v1786 = vadd.f32 0.0, %v1785
  %v1787 = vpop.f32.mrf.mxu0
  %1788 = vmatprep.mubr.f32.mxu0 %v1622
  %1789 = vmatmul.mubr.f32.gmra.mxu0 %v1621
  %v1790 = vpop.f32.mrf.mxu0
  %v1791 = vadd.f32 0.0, %v1790
  %v1792 = vpop.f32.mrf.mxu0
  %1793 = vmatprep.mubr.f32.mxu0 %v1624
  %1794 = vmatmul.mubr.f32.gmra.mxu0 %v1623
  %v1795 = vpop.f32.mrf.mxu0
  %v1796 = vadd.f32 0.0, %v1795
  %v1797 = vpop.f32.mrf.mxu0
  %1798 = vmatprep.mubr.f32.mxu0 %v1626
  %1799 = vmatmul.mubr.f32.gmra.mxu0 %v1625
  %v1800 = vpop.f32.mrf.mxu0
  %v1801 = vadd.f32 0.0, %v1800
  %v1802 = vpop.f32.mrf.mxu0
  %1803 = vmatprep.mubr.f32.mxu0 %v1628
  %1804 = vmatmul.mubr.f32.gmra.mxu0 %v1627
  %v1805 = vpop.f32.mrf.mxu0
  %v1806 = vadd.f32 0.0, %v1805
  %v1807 = vpop.f32.mrf.mxu0
  %1808 = vmatprep.mubr.f32.mxu0 %v1630
  %1809 = vmatmul.mubr.f32.gmra.mxu0 %v1629
  %v1810 = vpop.f32.mrf.mxu0
  %v1811 = vadd.f32 0.0, %v1810
  %v1812 = vpop.f32.mrf.mxu0
  %1813 = vmatprep.mubr.f32.mxu0 %v1632
  %1814 = vmatmul.mubr.f32.gmra.mxu0 %v1631
  %v1815 = vpop.f32.mrf.mxu0
  %v1816 = vadd.f32 0.0, %v1815
  %v1817 = vpop.f32.mrf.mxu0
  %1818 = vmatprep.mubr.f32.mxu0 %v1634
  %1819 = vmatmul.mubr.f32.gmra.mxu0 %v1633
  %v1820 = vpop.f32.mrf.mxu0
  %v1821 = vadd.f32 0.0, %v1820
  %v1822 = vpop.f32.mrf.mxu0
  %1823 = vmatprep.mubr.f32.mxu0 %v1636
  %1824 = vmatmul.mubr.f32.gmra.mxu0 %v1635
  %v1825 = vpop.f32.mrf.mxu0
  %v1826 = vadd.f32 0.0, %v1825
  %v1827 = vpop.f32.mrf.mxu0
  %1828 = vmatprep.mubr.f32.mxu0 %v1638
  %1829 = vmatmul.mubr.f32.gmra.mxu0 %v1637
  %v1830 = vpop.f32.mrf.mxu0
  %v1831 = vadd.f32 0.0, %v1830
  %v1832 = vpop.f32.mrf.mxu0
  %1833 = vmatprep.mubr.f32.mxu0 %v1640
  %1834 = vmatmul.mubr.f32.gmra.mxu0 %v1639
  %v1835 = vpop.f32.mrf.mxu0
  %v1836 = vadd.f32 0.0, %v1835
  %v1837 = vpop.f32.mrf.mxu0
  %1838 = vmatprep.mubr.f32.mxu0 %v1642
  %1839 = vmatmul.mubr.f32.gmra.mxu0 %v1641
  %v1840 = vpop.f32.mrf.mxu0
  %v1841 = vadd.f32 0.0, %v1840
  %v1842 = vpop.f32.mrf.mxu0
  %1843 = vmatprep.mubr.f32.mxu0 %v1644
  %1844 = vmatmul.mubr.f32.gmra.mxu0 %v1643
  %v1845 = vpop.f32.mrf.mxu0
  %v1846 = vadd.f32 0.0, %v1845
  %v1847 = vpop.f32.mrf.mxu0
  %1848 = vmatprep.mubr.f32.mxu0 %v1646
  %1849 = vmatmul.mubr.f32.gmra.mxu0 %v1645
  %v1850 = vpop.f32.mrf.mxu0
  %v1851 = vadd.f32 0.0, %v1850
  %v1852 = vpop.f32.mrf.mxu0
  %1853 = vmatprep.mubr.f32.mxu0 %v1648
  %1854 = vmatmul.mubr.f32.gmra.mxu0 %v1647
  %v1855 = vpop.f32.mrf.mxu0
  %v1856 = vadd.f32 0.0, %v1855
  %v1857 = vpop.f32.mrf.mxu0
  %1858 = vmatprep.mubr.f32.mxu0 %v1650
  %1859 = vmatmul.mubr.f32.gmra.mxu0 %v1649
  %v1860 = vpop.f32.mrf.mxu0
  %v1861 = vadd.f32 0.0, %v1860
  %v1862 = vpop.f32.mrf.mxu0
  %1863 = vmatprep.mubr.f32.mxu0 %v1652
  %1864 = vmatmul.mubr.f32.gmra.mxu0 %v1651
  %v1865 = vpop.f32.mrf.mxu0
  %v1866 = vadd.f32 0.0, %v1865
  %v1867 = vpop.f32.mrf.mxu0
  %1868 = vmatprep.mubr.f32.mxu0 %v1654
  %1869 = vmatmul.mubr.f32.gmra.mxu0 %v1653
  %v1870 = vpop.f32.mrf.mxu0
  %v1871 = vadd.f32 0.0, %v1870
  %v1872 = vpop.f32.mrf.mxu0
  %1873 = vmatprep.mubr.f32.mxu0 %v1656
  %1874 = vmatmul.mubr.f32.gmra.mxu0 %v1655
  %v1875 = vpop.f32.mrf.mxu0
  %v1876 = vadd.f32 0.0, %v1875
  %v1877 = vpop.f32.mrf.mxu0
  %1878 = vmatprep.mubr.f32.mxu0 %v1658
  %1879 = vmatmul.mubr.f32.gmra.mxu0 %v1657
  %v1880 = vpop.f32.mrf.mxu0
  %v1881 = vadd.f32 0.0, %v1880
  %v1882 = vpop.f32.mrf.mxu0
  %1883 = vdwg.mxu0
  %v1884 = vld [vmem:[%s3] sm:$0xff]
  %v1885 = vld [vmem:[%s3 + $0x8] sm:$0xff]
  %v1886 = vld [vmem:[%s3 + $0x10] sm:$0xff]
  %v1887 = vld [vmem:[%s3 + $0x18] sm:$0xff]
  %v1888 = vld [vmem:[%s3 + $0x20] sm:$0xff]
  %v1889 = vld [vmem:[%s3 + $0x28] sm:$0xff]
  %v1890 = vld [vmem:[%s3 + $0x30] sm:$0xff]
  %v1891 = vld [vmem:[%s3 + $0x38] sm:$0xff]
  %v1892 = vld [vmem:[%s3 + $0x40] sm:$0xff]
  %v1893 = vld [vmem:[%s3 + $0x48] sm:$0xff]
  %v1894 = vld [vmem:[%s3 + $0x50] sm:$0xff]
  %v1895 = vld [vmem:[%s3 + $0x58] sm:$0xff]
  %v1896 = vld [vmem:[%s3 + $0x60] sm:$0xff]
  %v1897 = vld [vmem:[%s3 + $0x68] sm:$0xff]
  %v1898 = vld [vmem:[%s3 + $0x70] sm:$0xff]
  %v1899 = vld [vmem:[%s3 + $0x78] sm:$0xff]
  %v1900 = vld [vmem:[%s3 + $0x80] sm:$0xff]
  %v1901 = vld [vmem:[%s3 + $0x88] sm:$0xff]
  %v1902 = vld [vmem:[%s3 + $0x90] sm:$0xff]
  %v1903 = vld [vmem:[%s3 + $0x98] sm:$0xff]
  %v1904 = vld [vmem:[%s3 + $0xa0] sm:$0xff]
  %v1905 = vld [vmem:[%s3 + $0xa8] sm:$0xff]
  %v1906 = vld [vmem:[%s3 + $0xb0] sm:$0xff]
  %v1907 = vld [vmem:[%s3 + $0xb8] sm:$0xff]
  %v1908 = vld [vmem:[%s3 + $0xc0] sm:$0xff]
  %v1909 = vld [vmem:[%s3 + $0xc8] sm:$0xff]
  %v1910 = vld [vmem:[%s3 + $0xd0] sm:$0xff]
  %v1911 = vld [vmem:[%s3 + $0xd8] sm:$0xff]
  %v1912 = vld [vmem:[%s3 + $0xe0] sm:$0xff]
  %v1913 = vld [vmem:[%s3 + $0xe8] sm:$0xff]
  %v1914 = vld [vmem:[%s3 + $0xf0] sm:$0xff]
  %v1915 = vld [vmem:[%s3 + $0xf8] sm:$0xff]
  %v1916 = vld [vmem:[%s3 + $0x100] sm:$0xff]
  %v1917 = vld [vmem:[%s3 + $0x108] sm:$0xff]
  %v1918 = vld [vmem:[%s3 + $0x110] sm:$0xff]
  %v1919 = vld [vmem:[%s3 + $0x118] sm:$0xff]
  %v1920 = vld [vmem:[%s3 + $0x120] sm:$0xff]
  %v1921 = vld [vmem:[%s3 + $0x128] sm:$0xff]
  %v1922 = vld [vmem:[%s3 + $0x130] sm:$0xff]
  %v1923 = vld [vmem:[%s3 + $0x138] sm:$0xff]
  %v1924 = vld [vmem:[%s3 + $0x140] sm:$0xff]
  %v1925 = vld [vmem:[%s3 + $0x148] sm:$0xff]
  %v1926 = vld [vmem:[%s3 + $0x150] sm:$0xff]
  %v1927 = vld [vmem:[%s3 + $0x158] sm:$0xff]
  %v1928 = vld [vmem:[%s3 + $0x160] sm:$0xff]
  %v1929 = vld [vmem:[%s3 + $0x168] sm:$0xff]
  %v1930 = vld [vmem:[%s3 + $0x170] sm:$0xff]
  %v1931 = vld [vmem:[%s3 + $0x178] sm:$0xff]
  %v1932 = vunpack.c.l.bf16 %v1884
  %v1933 = vunpack.c.h.bf16 %v1884
  %v1934 = vunpack.c.l.bf16 %v1885
  %v1935 = vunpack.c.h.bf16 %v1885
  %v1936 = vunpack.c.l.bf16 %v1886
  %v1937 = vunpack.c.h.bf16 %v1886
  %v1938 = vunpack.c.l.bf16 %v1887
  %v1939 = vunpack.c.h.bf16 %v1887
  %v1940 = vunpack.c.l.bf16 %v1888
  %v1941 = vunpack.c.h.bf16 %v1888
  %v1942 = vunpack.c.l.bf16 %v1889
  %v1943 = vunpack.c.h.bf16 %v1889
  %v1944 = vunpack.c.l.bf16 %v1890
  %v1945 = vunpack.c.h.bf16 %v1890
  %v1946 = vunpack.c.l.bf16 %v1891
  %v1947 = vunpack.c.h.bf16 %v1891
  %v1948 = vunpack.c.l.bf16 %v1892
  %v1949 = vunpack.c.h.bf16 %v1892
  %v1950 = vunpack.c.l.bf16 %v1893
  %v1951 = vunpack.c.h.bf16 %v1893
  %v1952 = vunpack.c.l.bf16 %v1894
  %v1953 = vunpack.c.h.bf16 %v1894
  %v1954 = vunpack.c.l.bf16 %v1895
  %v1955 = vunpack.c.h.bf16 %v1895
  %v1956 = vunpack.c.l.bf16 %v1896
  %v1957 = vunpack.c.h.bf16 %v1896
  %v1958 = vunpack.c.l.bf16 %v1897
  %v1959 = vunpack.c.h.bf16 %v1897
  %v1960 = vunpack.c.l.bf16 %v1898
  %v1961 = vunpack.c.h.bf16 %v1898
  %v1962 = vunpack.c.l.bf16 %v1899
  %v1963 = vunpack.c.h.bf16 %v1899
  %v1964 = vunpack.c.l.bf16 %v1900
  %v1965 = vunpack.c.h.bf16 %v1900
  %v1966 = vunpack.c.l.bf16 %v1901
  %v1967 = vunpack.c.h.bf16 %v1901
  %v1968 = vunpack.c.l.bf16 %v1902
  %v1969 = vunpack.c.h.bf16 %v1902
  %v1970 = vunpack.c.l.bf16 %v1903
  %v1971 = vunpack.c.h.bf16 %v1903
  %v1972 = vunpack.c.l.bf16 %v1904
  %v1973 = vunpack.c.h.bf16 %v1904
  %v1974 = vunpack.c.l.bf16 %v1905
  %v1975 = vunpack.c.h.bf16 %v1905
  %v1976 = vunpack.c.l.bf16 %v1906
  %v1977 = vunpack.c.h.bf16 %v1906
  %v1978 = vunpack.c.l.bf16 %v1907
  %v1979 = vunpack.c.h.bf16 %v1907
  %v1980 = vunpack.c.l.bf16 %v1908
  %v1981 = vunpack.c.h.bf16 %v1908
  %v1982 = vunpack.c.l.bf16 %v1909
  %v1983 = vunpack.c.h.bf16 %v1909
  %v1984 = vunpack.c.l.bf16 %v1910
  %v1985 = vunpack.c.h.bf16 %v1910
  %v1986 = vunpack.c.l.bf16 %v1911
  %v1987 = vunpack.c.h.bf16 %v1911
  %v1988 = vunpack.c.l.bf16 %v1912
  %v1989 = vunpack.c.h.bf16 %v1912
  %v1990 = vunpack.c.l.bf16 %v1913
  %v1991 = vunpack.c.h.bf16 %v1913
  %v1992 = vunpack.c.l.bf16 %v1914
  %v1993 = vunpack.c.h.bf16 %v1914
  %v1994 = vunpack.c.l.bf16 %v1915
  %v1995 = vunpack.c.h.bf16 %v1915
  %v1996 = vunpack.c.l.bf16 %v1916
  %v1997 = vunpack.c.h.bf16 %v1916
  %v1998 = vunpack.c.l.bf16 %v1917
  %v1999 = vunpack.c.h.bf16 %v1917
  %v2000 = vunpack.c.l.bf16 %v1918
  %v2001 = vunpack.c.h.bf16 %v1918
  %v2002 = vunpack.c.l.bf16 %v1919
  %v2003 = vunpack.c.h.bf16 %v1919
  %v2004 = vunpack.c.l.bf16 %v1920
  %v2005 = vunpack.c.h.bf16 %v1920
  %v2006 = vunpack.c.l.bf16 %v1921
  %v2007 = vunpack.c.h.bf16 %v1921
  %v2008 = vunpack.c.l.bf16 %v1922
  %v2009 = vunpack.c.h.bf16 %v1922
  %v2010 = vunpack.c.l.bf16 %v1923
  %v2011 = vunpack.c.h.bf16 %v1923
  %v2012 = vunpack.c.l.bf16 %v1924
  %v2013 = vunpack.c.h.bf16 %v1924
  %v2014 = vunpack.c.l.bf16 %v1925
  %v2015 = vunpack.c.h.bf16 %v1925
  %v2016 = vunpack.c.l.bf16 %v1926
  %v2017 = vunpack.c.h.bf16 %v1926
  %v2018 = vunpack.c.l.bf16 %v1927
  %v2019 = vunpack.c.h.bf16 %v1927
  %v2020 = vunpack.c.l.bf16 %v1928
  %v2021 = vunpack.c.h.bf16 %v1928
  %v2022 = vunpack.c.l.bf16 %v1929
  %v2023 = vunpack.c.h.bf16 %v1929
  %v2024 = vunpack.c.l.bf16 %v1930
  %v2025 = vunpack.c.h.bf16 %v1930
  %v2026 = vunpack.c.l.bf16 %v1931
  %v2027 = vunpack.c.h.bf16 %v1931
  %2028 = vmatprep.subr.mxu0 %v1963
  %2029 = vmatpush1.msra.mxu0 %v1962
  %2030 = vmatprep.subr.mxu0 %v1961
  %2031 = vmatpush1.msra.mxu0 %v1960
  %2032 = vmatprep.subr.mxu0 %v1959
  %2033 = vmatpush1.msra.mxu0 %v1958
  %2034 = vmatprep.subr.mxu0 %v1957
  %2035 = vmatpush1.msra.mxu0 %v1956
  %2036 = vmatprep.subr.mxu0 %v1955
  %2037 = vmatpush1.msra.mxu0 %v1954
  %2038 = vmatprep.subr.mxu0 %v1953
  %2039 = vmatpush1.msra.mxu0 %v1952
  %2040 = vmatprep.subr.mxu0 %v1951
  %2041 = vmatpush1.msra.mxu0 %v1950
  %2042 = vmatprep.subr.mxu0 %v1949
  %2043 = vmatpush1.msra.mxu0 %v1948
  %2044 = vmatprep.subr.mxu0 %v1947
  %2045 = vmatpush1.msra.mxu0 %v1946
  %2046 = vmatprep.subr.mxu0 %v1945
  %2047 = vmatpush1.msra.mxu0 %v1944
  %2048 = vmatprep.subr.mxu0 %v1943
  %2049 = vmatpush1.msra.mxu0 %v1942
  %2050 = vmatprep.subr.mxu0 %v1941
  %2051 = vmatpush1.msra.mxu0 %v1940
  %2052 = vmatprep.subr.mxu0 %v1939
  %2053 = vmatpush1.msra.mxu0 %v1938
  %2054 = vmatprep.subr.mxu0 %v1937
  %2055 = vmatpush1.msra.mxu0 %v1936
  %2056 = vmatprep.subr.mxu0 %v1935
  %2057 = vmatpush1.msra.mxu0 %v1934
  %2058 = vmatprep.subr.mxu0 %v1933
  %2059 = vmatpush1.msra.mxu0 %v1932
  %2060 = vmatprep.subr.mxu0 %v1995
  %2061 = vmatpush2.msra.mxu0 %v1994
  %2062 = vmatprep.subr.mxu0 %v1993
  %2063 = vmatpush2.msra.mxu0 %v1992
  %2064 = vmatprep.subr.mxu0 %v1991
  %2065 = vmatpush2.msra.mxu0 %v1990
  %2066 = vmatprep.subr.mxu0 %v1989
  %2067 = vmatpush2.msra.mxu0 %v1988
  %2068 = vmatprep.subr.mxu0 %v1987
  %2069 = vmatpush2.msra.mxu0 %v1986
  %2070 = vmatprep.subr.mxu0 %v1985
  %2071 = vmatpush2.msra.mxu0 %v1984
  %2072 = vmatprep.subr.mxu0 %v1983
  %2073 = vmatpush2.msra.mxu0 %v1982
  %2074 = vmatprep.subr.mxu0 %v1981
  %2075 = vmatpush2.msra.mxu0 %v1980
  %2076 = vmatprep.subr.mxu0 %v1979
  %2077 = vmatpush2.msra.mxu0 %v1978
  %2078 = vmatprep.subr.mxu0 %v1977
  %2079 = vmatpush2.msra.mxu0 %v1976
  %2080 = vmatprep.subr.mxu0 %v1975
  %2081 = vmatpush2.msra.mxu0 %v1974
  %2082 = vmatprep.subr.mxu0 %v1973
  %2083 = vmatpush2.msra.mxu0 %v1972
  %2084 = vmatprep.subr.mxu0 %v1971
  %2085 = vmatpush2.msra.mxu0 %v1970
  %2086 = vmatprep.subr.mxu0 %v1969
  %2087 = vmatpush2.msra.mxu0 %v1968
  %2088 = vmatprep.subr.mxu0 %v1967
  %2089 = vmatpush2.msra.mxu0 %v1966
  %2090 = vmatprep.subr.mxu0 %v1965
  %2091 = vmatpush2.msra.mxu0 %v1964
  %2092 = vmatprep.mubr.f32.mxu0 %v1404
  %2093 = vmatmul.mubr.f32.gmra.mxu0 %v1082
  %v2094 = vpop.f32.mrf.mxu0
  %v2095 = vadd.f32 0.0, %v2094
  %v2096 = vpop.f32.mrf.mxu0
  %v2097 = vadd.f32 0.0, %v2096
  %2098 = vmatprep.mubr.f32.mxu0 %v1409
  %2099 = vmatmul.mubr.f32.gmra.mxu0 %v1087
  %v2100 = vpop.f32.mrf.mxu0
  %v2101 = vadd.f32 0.0, %v2100
  %v2102 = vpop.f32.mrf.mxu0
  %v2103 = vadd.f32 0.0, %v2102
  %2104 = vmatprep.mubr.f32.mxu0 %v1414
  %2105 = vmatmul.mubr.f32.gmra.mxu0 %v1092
  %v2106 = vpop.f32.mrf.mxu0
  %v2107 = vadd.f32 0.0, %v2106
  %v2108 = vpop.f32.mrf.mxu0
  %v2109 = vadd.f32 0.0, %v2108
  %2110 = vmatprep.mubr.f32.mxu0 %v1419
  %2111 = vmatmul.mubr.f32.gmra.mxu0 %v1097
  %v2112 = vpop.f32.mrf.mxu0
  %v2113 = vadd.f32 0.0, %v2112
  %v2114 = vpop.f32.mrf.mxu0
  %v2115 = vadd.f32 0.0, %v2114
  %2116 = vmatprep.mubr.f32.mxu0 %v1424
  %2117 = vmatmul.mubr.f32.gmra.mxu0 %v1102
  %v2118 = vpop.f32.mrf.mxu0
  %v2119 = vadd.f32 0.0, %v2118
  %v2120 = vpop.f32.mrf.mxu0
  %v2121 = vadd.f32 0.0, %v2120
  %2122 = vmatprep.mubr.f32.mxu0 %v1429
  %2123 = vmatmul.mubr.f32.gmra.mxu0 %v1107
  %v2124 = vpop.f32.mrf.mxu0
  %v2125 = vadd.f32 0.0, %v2124
  %v2126 = vpop.f32.mrf.mxu0
  %v2127 = vadd.f32 0.0, %v2126
  %2128 = vmatprep.mubr.f32.mxu0 %v1434
  %2129 = vmatmul.mubr.f32.gmra.mxu0 %v1112
  %v2130 = vpop.f32.mrf.mxu0
  %v2131 = vadd.f32 0.0, %v2130
  %v2132 = vpop.f32.mrf.mxu0
  %v2133 = vadd.f32 0.0, %v2132
  %2134 = vmatprep.mubr.f32.mxu0 %v1439
  %2135 = vmatmul.mubr.f32.gmra.mxu0 %v1117
  %v2136 = vpop.f32.mrf.mxu0
  %v2137 = vadd.f32 0.0, %v2136
  %v2138 = vpop.f32.mrf.mxu0
  %v2139 = vadd.f32 0.0, %v2138
  %2140 = vmatprep.mubr.f32.mxu0 %v1444
  %2141 = vmatmul.mubr.f32.gmra.mxu0 %v1122
  %v2142 = vpop.f32.mrf.mxu0
  %v2143 = vadd.f32 0.0, %v2142
  %v2144 = vpop.f32.mrf.mxu0
  %v2145 = vadd.f32 0.0, %v2144
  %2146 = vmatprep.mubr.f32.mxu0 %v1449
  %2147 = vmatmul.mubr.f32.gmra.mxu0 %v1127
  %v2148 = vpop.f32.mrf.mxu0
  %v2149 = vadd.f32 0.0, %v2148
  %v2150 = vpop.f32.mrf.mxu0
  %v2151 = vadd.f32 0.0, %v2150
  %2152 = vmatprep.mubr.f32.mxu0 %v1454
  %2153 = vmatmul.mubr.f32.gmra.mxu0 %v1132
  %v2154 = vpop.f32.mrf.mxu0
  %v2155 = vadd.f32 0.0, %v2154
  %v2156 = vpop.f32.mrf.mxu0
  %v2157 = vadd.f32 0.0, %v2156
  %2158 = vmatprep.mubr.f32.mxu0 %v1459
  %2159 = vmatmul.mubr.f32.gmra.mxu0 %v1137
  %v2160 = vpop.f32.mrf.mxu0
  %v2161 = vadd.f32 0.0, %v2160
  %v2162 = vpop.f32.mrf.mxu0
  %v2163 = vadd.f32 0.0, %v2162
  %2164 = vmatprep.mubr.f32.mxu0 %v1464
  %2165 = vmatmul.mubr.f32.gmra.mxu0 %v1142
  %v2166 = vpop.f32.mrf.mxu0
  %v2167 = vadd.f32 0.0, %v2166
  %v2168 = vpop.f32.mrf.mxu0
  %v2169 = vadd.f32 0.0, %v2168
  %2170 = vmatprep.mubr.f32.mxu0 %v1469
  %2171 = vmatmul.mubr.f32.gmra.mxu0 %v1147
  %v2172 = vpop.f32.mrf.mxu0
  %v2173 = vadd.f32 0.0, %v2172
  %v2174 = vpop.f32.mrf.mxu0
  %v2175 = vadd.f32 0.0, %v2174
  %2176 = vmatprep.mubr.f32.mxu0 %v1474
  %2177 = vmatmul.mubr.f32.gmra.mxu0 %v1152
  %v2178 = vpop.f32.mrf.mxu0
  %v2179 = vadd.f32 0.0, %v2178
  %v2180 = vpop.f32.mrf.mxu0
  %v2181 = vadd.f32 0.0, %v2180
  %2182 = vmatprep.mubr.f32.mxu0 %v1479
  %2183 = vmatmul.mubr.f32.gmra.mxu0 %v1157
  %v2184 = vpop.f32.mrf.mxu0
  %v2185 = vadd.f32 0.0, %v2184
  %v2186 = vpop.f32.mrf.mxu0
  %v2187 = vadd.f32 0.0, %v2186
  %2188 = vmatprep.mubr.f32.mxu0 %v1484
  %2189 = vmatmul.mubr.f32.gmra.mxu0 %v1162
  %v2190 = vpop.f32.mrf.mxu0
  %v2191 = vadd.f32 0.0, %v2190
  %v2192 = vpop.f32.mrf.mxu0
  %v2193 = vadd.f32 0.0, %v2192
  %2194 = vmatprep.mubr.f32.mxu0 %v1489
  %2195 = vmatmul.mubr.f32.gmra.mxu0 %v1167
  %v2196 = vpop.f32.mrf.mxu0
  %v2197 = vadd.f32 0.0, %v2196
  %v2198 = vpop.f32.mrf.mxu0
  %v2199 = vadd.f32 0.0, %v2198
  %2200 = vmatprep.mubr.f32.mxu0 %v1494
  %2201 = vmatmul.mubr.f32.gmra.mxu0 %v1172
  %v2202 = vpop.f32.mrf.mxu0
  %v2203 = vadd.f32 0.0, %v2202
  %v2204 = vpop.f32.mrf.mxu0
  %v2205 = vadd.f32 0.0, %v2204
  %2206 = vmatprep.mubr.f32.mxu0 %v1499
  %2207 = vmatmul.mubr.f32.gmra.mxu0 %v1177
  %v2208 = vpop.f32.mrf.mxu0
  %v2209 = vadd.f32 0.0, %v2208
  %v2210 = vpop.f32.mrf.mxu0
  %v2211 = vadd.f32 0.0, %v2210
  %2212 = vmatprep.mubr.f32.mxu0 %v1504
  %2213 = vmatmul.mubr.f32.gmra.mxu0 %v1182
  %v2214 = vpop.f32.mrf.mxu0
  %v2215 = vadd.f32 0.0, %v2214
  %v2216 = vpop.f32.mrf.mxu0
  %v2217 = vadd.f32 0.0, %v2216
  %2218 = vmatprep.mubr.f32.mxu0 %v1509
  %2219 = vmatmul.mubr.f32.gmra.mxu0 %v1187
  %v2220 = vpop.f32.mrf.mxu0
  %v2221 = vadd.f32 0.0, %v2220
  %v2222 = vpop.f32.mrf.mxu0
  %v2223 = vadd.f32 0.0, %v2222
  %2224 = vmatprep.mubr.f32.mxu0 %v1514
  %2225 = vmatmul.mubr.f32.gmra.mxu0 %v1192
  %v2226 = vpop.f32.mrf.mxu0
  %v2227 = vadd.f32 0.0, %v2226
  %v2228 = vpop.f32.mrf.mxu0
  %v2229 = vadd.f32 0.0, %v2228
  %2230 = vmatprep.mubr.f32.mxu0 %v1519
  %2231 = vmatmul.mubr.f32.gmra.mxu0 %v1197
  %v2232 = vpop.f32.mrf.mxu0
  %v2233 = vadd.f32 0.0, %v2232
  %v2234 = vpop.f32.mrf.mxu0
  %v2235 = vadd.f32 0.0, %v2234
  %2236 = vmatprep.mubr.f32.mxu0 %v1524
  %2237 = vmatmul.mubr.f32.gmra.mxu0 %v1202
  %v2238 = vpop.f32.mrf.mxu0
  %v2239 = vadd.f32 0.0, %v2238
  %v2240 = vpop.f32.mrf.mxu0
  %v2241 = vadd.f32 0.0, %v2240
  %2242 = vmatprep.mubr.f32.mxu0 %v1529
  %2243 = vmatmul.mubr.f32.gmra.mxu0 %v1207
  %v2244 = vpop.f32.mrf.mxu0
  %v2245 = vadd.f32 0.0, %v2244
  %v2246 = vpop.f32.mrf.mxu0
  %v2247 = vadd.f32 0.0, %v2246
  %2248 = vmatprep.mubr.f32.mxu0 %v1534
  %2249 = vmatmul.mubr.f32.gmra.mxu0 %v1212
  %v2250 = vpop.f32.mrf.mxu0
  %v2251 = vadd.f32 0.0, %v2250
  %v2252 = vpop.f32.mrf.mxu0
  %v2253 = vadd.f32 0.0, %v2252
  %2254 = vmatprep.mubr.f32.mxu0 %v1539
  %2255 = vmatmul.mubr.f32.gmra.mxu0 %v1217
  %v2256 = vpop.f32.mrf.mxu0
  %v2257 = vadd.f32 0.0, %v2256
  %v2258 = vpop.f32.mrf.mxu0
  %v2259 = vadd.f32 0.0, %v2258
  %2260 = vmatprep.mubr.f32.mxu0 %v1544
  %2261 = vmatmul.mubr.f32.gmra.mxu0 %v1222
  %v2262 = vpop.f32.mrf.mxu0
  %v2263 = vadd.f32 0.0, %v2262
  %v2264 = vpop.f32.mrf.mxu0
  %v2265 = vadd.f32 0.0, %v2264
  %2266 = vmatprep.mubr.f32.mxu0 %v1549
  %2267 = vmatmul.mubr.f32.gmra.mxu0 %v1227
  %v2268 = vpop.f32.mrf.mxu0
  %v2269 = vadd.f32 0.0, %v2268
  %v2270 = vpop.f32.mrf.mxu0
  %v2271 = vadd.f32 0.0, %v2270
  %2272 = vmatprep.mubr.f32.mxu0 %v1554
  %2273 = vmatmul.mubr.f32.gmra.mxu0 %v1232
  %v2274 = vpop.f32.mrf.mxu0
  %v2275 = vadd.f32 0.0, %v2274
  %v2276 = vpop.f32.mrf.mxu0
  %v2277 = vadd.f32 0.0, %v2276
  %2278 = vmatprep.mubr.f32.mxu0 %v1559
  %2279 = vmatmul.mubr.f32.gmra.mxu0 %v1237
  %v2280 = vpop.f32.mrf.mxu0
  %v2281 = vadd.f32 0.0, %v2280
  %v2282 = vpop.f32.mrf.mxu0
  %v2283 = vadd.f32 0.0, %v2282
  %2284 = vdwg.mxu0
  %2285 = vmatprep.subr.mxu0 %v2027
  %2286 = vmatpush1.msra.mxu0 %v2026
  %2287 = vmatprep.subr.mxu0 %v2025
  %2288 = vmatpush1.msra.mxu0 %v2024
  %2289 = vmatprep.subr.mxu0 %v2023
  %2290 = vmatpush1.msra.mxu0 %v2022
  %2291 = vmatprep.subr.mxu0 %v2021
  %2292 = vmatpush1.msra.mxu0 %v2020
  %2293 = vmatprep.subr.mxu0 %v2019
  %2294 = vmatpush1.msra.mxu0 %v2018
  %2295 = vmatprep.subr.mxu0 %v2017
  %2296 = vmatpush1.msra.mxu0 %v2016
  %2297 = vmatprep.subr.mxu0 %v2015
  %2298 = vmatpush1.msra.mxu0 %v2014
  %2299 = vmatprep.subr.mxu0 %v2013
  %2300 = vmatpush1.msra.mxu0 %v2012
  %2301 = vmatprep.subr.mxu0 %v2011
  %2302 = vmatpush1.msra.mxu0 %v2010
  %2303 = vmatprep.subr.mxu0 %v2009
  %2304 = vmatpush1.msra.mxu0 %v2008
  %2305 = vmatprep.subr.mxu0 %v2007
  %2306 = vmatpush1.msra.mxu0 %v2006
  %2307 = vmatprep.subr.mxu0 %v2005
  %2308 = vmatpush1.msra.mxu0 %v2004
  %2309 = vmatprep.subr.mxu0 %v2003
  %2310 = vmatpush1.msra.mxu0 %v2002
  %2311 = vmatprep.subr.mxu0 %v2001
  %2312 = vmatpush1.msra.mxu0 %v2000
  %2313 = vmatprep.subr.mxu0 %v1999
  %2314 = vmatpush1.msra.mxu0 %v1998
  %2315 = vmatprep.subr.mxu0 %v1997
  %2316 = vmatpush1.msra.mxu0 %v1996
  %2317 = vmatprep.subr.mxu0 0.0
  %2318 = vmatpush2.msra.mxu0 0.0
  %2319 = vmatprep.subr.mxu0 0.0
  %2320 = vmatpush2.msra.mxu0 0.0
  %2321 = vmatprep.subr.mxu0 0.0
  %2322 = vmatpush2.msra.mxu0 0.0
  %2323 = vmatprep.subr.mxu0 0.0
  %2324 = vmatpush2.msra.mxu0 0.0
  %2325 = vmatprep.subr.mxu0 0.0
  %2326 = vmatpush2.msra.mxu0 0.0
  %2327 = vmatprep.subr.mxu0 0.0
  %2328 = vmatpush2.msra.mxu0 0.0
  %2329 = vmatprep.subr.mxu0 0.0
  %2330 = vmatpush2.msra.mxu0 0.0
  %2331 = vmatprep.subr.mxu0 0.0
  %2332 = vmatpush2.msra.mxu0 0.0
  %2333 = vmatprep.subr.mxu0 0.0
  %2334 = vmatpush2.msra.mxu0 0.0
  %2335 = vmatprep.subr.mxu0 0.0
  %2336 = vmatpush2.msra.mxu0 0.0
  %2337 = vmatprep.subr.mxu0 0.0
  %2338 = vmatpush2.msra.mxu0 0.0
  %2339 = vmatprep.subr.mxu0 0.0
  %2340 = vmatpush2.msra.mxu0 0.0
  %2341 = vmatprep.subr.mxu0 0.0
  %2342 = vmatpush2.msra.mxu0 0.0
  %2343 = vmatprep.subr.mxu0 0.0
  %2344 = vmatpush2.msra.mxu0 0.0
  %2345 = vmatprep.subr.mxu0 0.0
  %2346 = vmatpush2.msra.mxu0 0.0
  %2347 = vmatprep.subr.mxu0 0.0
  %2348 = vmatpush2.msra.mxu0 0.0
  %2349 = vmatprep.mubr.f32.mxu0 0.0
  %2350 = vmatmul.mubr.f32.gmra.mxu0 %v1726
  %v2351 = vpop.f32.mrf.mxu0
  %v2352 = vadd.f32 %v2095, %v2351
  %v2353 = vpop.f32.mrf.mxu0
  %v2354 = vadd.f32 %v2097, %v2353
  %2355 = vmatprep.mubr.f32.mxu0 0.0
  %2356 = vmatmul.mubr.f32.gmra.mxu0 %v1731
  %v2357 = vpop.f32.mrf.mxu0
  %v2358 = vadd.f32 %v2101, %v2357
  %v2359 = vpop.f32.mrf.mxu0
  %v2360 = vadd.f32 %v2103, %v2359
  %2361 = vmatprep.mubr.f32.mxu0 0.0
  %2362 = vmatmul.mubr.f32.gmra.mxu0 %v1736
  %v2363 = vpop.f32.mrf.mxu0
  %v2364 = vadd.f32 %v2107, %v2363
  %v2365 = vpop.f32.mrf.mxu0
  %v2366 = vadd.f32 %v2109, %v2365
  %2367 = vmatprep.mubr.f32.mxu0 0.0
  %2368 = vmatmul.mubr.f32.gmra.mxu0 %v1741
  %v2369 = vpop.f32.mrf.mxu0
  %v2370 = vadd.f32 %v2113, %v2369
  %v2371 = vpop.f32.mrf.mxu0
  %v2372 = vadd.f32 %v2115, %v2371
  %2373 = vmatprep.mubr.f32.mxu0 0.0
  %2374 = vmatmul.mubr.f32.gmra.mxu0 %v1746
  %v2375 = vpop.f32.mrf.mxu0
  %v2376 = vadd.f32 %v2119, %v2375
  %v2377 = vpop.f32.mrf.mxu0
  %v2378 = vadd.f32 %v2121, %v2377
  %2379 = vmatprep.mubr.f32.mxu0 0.0
  %2380 = vmatmul.mubr.f32.gmra.mxu0 %v1751
  %v2381 = vpop.f32.mrf.mxu0
  %v2382 = vadd.f32 %v2125, %v2381
  %v2383 = vpop.f32.mrf.mxu0
  %v2384 = vadd.f32 %v2127, %v2383
  %2385 = vmatprep.mubr.f32.mxu0 0.0
  %2386 = vmatmul.mubr.f32.gmra.mxu0 %v1756
  %v2387 = vpop.f32.mrf.mxu0
  %v2388 = vadd.f32 %v2131, %v2387
  %v2389 = vpop.f32.mrf.mxu0
  %v2390 = vadd.f32 %v2133, %v2389
  %2391 = vmatprep.mubr.f32.mxu0 0.0
  %2392 = vmatmul.mubr.f32.gmra.mxu0 %v1761
  %v2393 = vpop.f32.mrf.mxu0
  %v2394 = vadd.f32 %v2137, %v2393
  %v2395 = vpop.f32.mrf.mxu0
  %v2396 = vadd.f32 %v2139, %v2395
  %2397 = vmatprep.mubr.f32.mxu0 0.0
  %2398 = vmatmul.mubr.f32.gmra.mxu0 %v1766
  %v2399 = vpop.f32.mrf.mxu0
  %v2400 = vadd.f32 %v2143, %v2399
  %v2401 = vpop.f32.mrf.mxu0
  %v2402 = vadd.f32 %v2145, %v2401
  %2403 = vmatprep.mubr.f32.mxu0 0.0
  %2404 = vmatmul.mubr.f32.gmra.mxu0 %v1771
  %v2405 = vpop.f32.mrf.mxu0
  %v2406 = vadd.f32 %v2149, %v2405
  %v2407 = vpop.f32.mrf.mxu0
  %v2408 = vadd.f32 %v2151, %v2407
  %2409 = vmatprep.mubr.f32.mxu0 0.0
  %2410 = vmatmul.mubr.f32.gmra.mxu0 %v1776
  %v2411 = vpop.f32.mrf.mxu0
  %v2412 = vadd.f32 %v2155, %v2411
  %v2413 = vpop.f32.mrf.mxu0
  %v2414 = vadd.f32 %v2157, %v2413
  %2415 = vmatprep.mubr.f32.mxu0 0.0
  %2416 = vmatmul.mubr.f32.gmra.mxu0 %v1781
  %v2417 = vpop.f32.mrf.mxu0
  %v2418 = vadd.f32 %v2161, %v2417
  %v2419 = vpop.f32.mrf.mxu0
  %v2420 = vadd.f32 %v2163, %v2419
  %2421 = vmatprep.mubr.f32.mxu0 0.0
  %2422 = vmatmul.mubr.f32.gmra.mxu0 %v1786
  %v2423 = vpop.f32.mrf.mxu0
  %v2424 = vadd.f32 %v2167, %v2423
  %v2425 = vpop.f32.mrf.mxu0
  %v2426 = vadd.f32 %v2169, %v2425
  %2427 = vmatprep.mubr.f32.mxu0 0.0
  %2428 = vmatmul.mubr.f32.gmra.mxu0 %v1791
  %v2429 = vpop.f32.mrf.mxu0
  %v2430 = vadd.f32 %v2173, %v2429
  %v2431 = vpop.f32.mrf.mxu0
  %v2432 = vadd.f32 %v2175, %v2431
  %2433 = vmatprep.mubr.f32.mxu0 0.0
  %2434 = vmatmul.mubr.f32.gmra.mxu0 %v1796
  %v2435 = vpop.f32.mrf.mxu0
  %v2436 = vadd.f32 %v2179, %v2435
  %v2437 = vpop.f32.mrf.mxu0
  %v2438 = vadd.f32 %v2181, %v2437
  %2439 = vmatprep.mubr.f32.mxu0 0.0
  %2440 = vmatmul.mubr.f32.gmra.mxu0 %v1801
  %v2441 = vpop.f32.mrf.mxu0
  %v2442 = vadd.f32 %v2185, %v2441
  %v2443 = vpop.f32.mrf.mxu0
  %v2444 = vadd.f32 %v2187, %v2443
  %2445 = vmatprep.mubr.f32.mxu0 0.0
  %2446 = vmatmul.mubr.f32.gmra.mxu0 %v1806
  %v2447 = vpop.f32.mrf.mxu0
  %v2448 = vadd.f32 %v2191, %v2447
  %v2449 = vpop.f32.mrf.mxu0
  %v2450 = vadd.f32 %v2193, %v2449
  %2451 = vmatprep.mubr.f32.mxu0 0.0
  %2452 = vmatmul.mubr.f32.gmra.mxu0 %v1811
  %v2453 = vpop.f32.mrf.mxu0
  %v2454 = vadd.f32 %v2197, %v2453
  %v2455 = vpop.f32.mrf.mxu0
  %v2456 = vadd.f32 %v2199, %v2455
  %2457 = vmatprep.mubr.f32.mxu0 0.0
  %2458 = vmatmul.mubr.f32.gmra.mxu0 %v1816
  %v2459 = vpop.f32.mrf.mxu0
  %v2460 = vadd.f32 %v2203, %v2459
  %v2461 = vpop.f32.mrf.mxu0
  %v2462 = vadd.f32 %v2205, %v2461
  %2463 = vmatprep.mubr.f32.mxu0 0.0
  %2464 = vmatmul.mubr.f32.gmra.mxu0 %v1821
  %v2465 = vpop.f32.mrf.mxu0
  %v2466 = vadd.f32 %v2209, %v2465
  %v2467 = vpop.f32.mrf.mxu0
  %v2468 = vadd.f32 %v2211, %v2467
  %2469 = vmatprep.mubr.f32.mxu0 0.0
  %2470 = vmatmul.mubr.f32.gmra.mxu0 %v1826
  %v2471 = vpop.f32.mrf.mxu0
  %v2472 = vadd.f32 %v2215, %v2471
  %v2473 = vpop.f32.mrf.mxu0
  %v2474 = vadd.f32 %v2217, %v2473
  %2475 = vmatprep.mubr.f32.mxu0 0.0
  %2476 = vmatmul.mubr.f32.gmra.mxu0 %v1831
  %v2477 = vpop.f32.mrf.mxu0
  %v2478 = vadd.f32 %v2221, %v2477
  %v2479 = vpop.f32.mrf.mxu0
  %v2480 = vadd.f32 %v2223, %v2479
  %2481 = vmatprep.mubr.f32.mxu0 0.0
  %2482 = vmatmul.mubr.f32.gmra.mxu0 %v1836
  %v2483 = vpop.f32.mrf.mxu0
  %v2484 = vadd.f32 %v2227, %v2483
  %v2485 = vpop.f32.mrf.mxu0
  %v2486 = vadd.f32 %v2229, %v2485
  %2487 = vmatprep.mubr.f32.mxu0 0.0
  %2488 = vmatmul.mubr.f32.gmra.mxu0 %v1841
  %v2489 = vpop.f32.mrf.mxu0
  %v2490 = vadd.f32 %v2233, %v2489
  %v2491 = vpop.f32.mrf.mxu0
  %v2492 = vadd.f32 %v2235, %v2491
  %2493 = vmatprep.mubr.f32.mxu0 0.0
  %2494 = vmatmul.mubr.f32.gmra.mxu0 %v1846
  %v2495 = vpop.f32.mrf.mxu0
  %v2496 = vadd.f32 %v2239, %v2495
  %v2497 = vpop.f32.mrf.mxu0
  %v2498 = vadd.f32 %v2241, %v2497
  %2499 = vmatprep.mubr.f32.mxu0 0.0
  %2500 = vmatmul.mubr.f32.gmra.mxu0 %v1851
  %v2501 = vpop.f32.mrf.mxu0
  %v2502 = vadd.f32 %v2245, %v2501
  %v2503 = vpop.f32.mrf.mxu0
  %v2504 = vadd.f32 %v2247, %v2503
  %2505 = vmatprep.mubr.f32.mxu0 0.0
  %2506 = vmatmul.mubr.f32.gmra.mxu0 %v1856
  %v2507 = vpop.f32.mrf.mxu0
  %v2508 = vadd.f32 %v2251, %v2507
  %v2509 = vpop.f32.mrf.mxu0
  %v2510 = vadd.f32 %v2253, %v2509
  %2511 = vmatprep.mubr.f32.mxu0 0.0
  %2512 = vmatmul.mubr.f32.gmra.mxu0 %v1861
  %v2513 = vpop.f32.mrf.mxu0
  %v2514 = vadd.f32 %v2257, %v2513
  %v2515 = vpop.f32.mrf.mxu0
  %v2516 = vadd.f32 %v2259, %v2515
  %2517 = vmatprep.mubr.f32.mxu0 0.0
  %2518 = vmatmul.mubr.f32.gmra.mxu0 %v1866
  %v2519 = vpop.f32.mrf.mxu0
  %v2520 = vadd.f32 %v2263, %v2519
  %v2521 = vpop.f32.mrf.mxu0
  %v2522 = vadd.f32 %v2265, %v2521
  %2523 = vmatprep.mubr.f32.mxu0 0.0
  %2524 = vmatmul.mubr.f32.gmra.mxu0 %v1871
  %v2525 = vpop.f32.mrf.mxu0
  %v2526 = vadd.f32 %v2269, %v2525
  %v2527 = vpop.f32.mrf.mxu0
  %v2528 = vadd.f32 %v2271, %v2527
  %2529 = vmatprep.mubr.f32.mxu0 0.0
  %2530 = vmatmul.mubr.f32.gmra.mxu0 %v1876
  %v2531 = vpop.f32.mrf.mxu0
  %v2532 = vadd.f32 %v2275, %v2531
  %v2533 = vpop.f32.mrf.mxu0
  %v2534 = vadd.f32 %v2277, %v2533
  %2535 = vmatprep.mubr.f32.mxu0 0.0
  %2536 = vmatmul.mubr.f32.gmra.mxu0 %v1881
  %v2537 = vpop.f32.mrf.mxu0
  %v2538 = vadd.f32 %v2281, %v2537
  %v2539 = vpop.f32.mrf.mxu0
  %v2540 = vadd.f32 %v2283, %v2539
  %2541 = vdwg.mxu0
  %v2574 = vunpack.c.l.b16 %v53
  %v2575 = vunpack.c.h.b16 %v53
  %v2576 = vunpack.c.l.b16 %v54
  %v2577 = vunpack.c.h.b16 %v54
  %v2578 = vunpack.c.l.b16 %v55
  %v2579 = vunpack.c.h.b16 %v55
  %v2580 = vunpack.c.l.b16 %v56
  %v2581 = vunpack.c.h.b16 %v56
  %v2582 = vunpack.c.l.b16 %v57
  %v2583 = vunpack.c.h.b16 %v57
  %v2584 = vunpack.c.l.b16 %v58
  %v2585 = vunpack.c.h.b16 %v58
  %v2586 = vunpack.c.l.b16 %v59
  %v2587 = vunpack.c.h.b16 %v59
  %v2588 = vunpack.c.l.b16 %v60
  %v2589 = vunpack.c.h.b16 %v60
  %v2590 = vunpack.c.l.b16 %v61
  %v2591 = vunpack.c.h.b16 %v61
  %v2592 = vunpack.c.l.b16 %v62
  %v2593 = vunpack.c.h.b16 %v62
  %v2594 = vunpack.c.l.b16 %v63
  %v2595 = vunpack.c.h.b16 %v63
  %v2596 = vunpack.c.l.b16 %v64
  %v2597 = vunpack.c.h.b16 %v64
  %v2598 = vunpack.c.l.b16 %v65
  %v2599 = vunpack.c.h.b16 %v65
  %v2600 = vunpack.c.l.b16 %v66
  %v2601 = vunpack.c.h.b16 %v66
  %v2602 = vunpack.c.l.b16 %v67
  %v2603 = vunpack.c.h.b16 %v67
  %v2604 = vunpack.c.l.b16 %v68
  %v2605 = vunpack.c.h.b16 %v68
  %v2606 = vunpack.c.l.b16 %v69
  %v2607 = vunpack.c.h.b16 %v69
  %v2608 = vunpack.c.l.b16 %v70
  %v2609 = vunpack.c.h.b16 %v70
  %v2610 = vunpack.c.l.b16 %v71
  %v2611 = vunpack.c.h.b16 %v71
  %v2612 = vunpack.c.l.b16 %v72
  %v2613 = vunpack.c.h.b16 %v72
  %v2614 = vunpack.c.l.b16 %v73
  %v2615 = vunpack.c.h.b16 %v73
  %v2616 = vunpack.c.l.b16 %v74
  %v2617 = vunpack.c.h.b16 %v74
  %v2618 = vunpack.c.l.b16 %v75
  %v2619 = vunpack.c.h.b16 %v75
  %v2620 = vunpack.c.l.b16 %v76
  %v2621 = vunpack.c.h.b16 %v76
  %v2622 = vunpack.c.l.b16 %v77
  %v2623 = vunpack.c.h.b16 %v77
  %v2624 = vunpack.c.l.b16 %v78
  %v2625 = vunpack.c.h.b16 %v78
  %v2626 = vunpack.c.l.b16 %v79
  %v2627 = vunpack.c.h.b16 %v79
  %v2628 = vunpack.c.l.b16 %v80
  %v2629 = vunpack.c.h.b16 %v80
  %v2630 = vunpack.c.l.b16 %v81
  %v2631 = vunpack.c.h.b16 %v81
  %v2632 = vunpack.c.l.b16 %v82
  %v2633 = vunpack.c.h.b16 %v82
  %v2634 = vunpack.c.l.b16 %v83
  %v2635 = vunpack.c.h.b16 %v83
  %v2636 = vunpack.c.l.b16 %v84
  %v2637 = vunpack.c.h.b16 %v84
  %v2638 = vpack.c.b16 %v2576, %v2574
  %v2639 = vpack.c.b16 %v2577, %v2575
  %v2640 = vpack.c.b16 %v2580, %v2578
  %v2641 = vpack.c.b16 %v2581, %v2579
  %v2642 = vpack.c.b16 %v2584, %v2582
  %v2643 = vpack.c.b16 %v2585, %v2583
  %v2644 = vpack.c.b16 %v2588, %v2586
  %v2645 = vpack.c.b16 %v2589, %v2587
  %v2646 = vpack.c.b16 %v2592, %v2590
  %v2647 = vpack.c.b16 %v2593, %v2591
  %v2648 = vpack.c.b16 %v2596, %v2594
  %v2649 = vpack.c.b16 %v2597, %v2595
  %v2650 = vpack.c.b16 %v2600, %v2598
  %v2651 = vpack.c.b16 %v2601, %v2599
  %v2652 = vpack.c.b16 %v2604, %v2602
  %v2653 = vpack.c.b16 %v2605, %v2603
  %v2654 = vpack.c.b16 %v2608, %v2606
  %v2655 = vpack.c.b16 %v2609, %v2607
  %v2656 = vpack.c.b16 %v2612, %v2610
  %v2657 = vpack.c.b16 %v2613, %v2611
  %v2658 = vpack.c.b16 %v2616, %v2614
  %v2659 = vpack.c.b16 %v2617, %v2615
  %v2660 = vpack.c.b16 %v2620, %v2618
  %v2661 = vpack.c.b16 %v2621, %v2619
  %v2662 = vpack.c.b16 %v2624, %v2622
  %v2663 = vpack.c.b16 %v2625, %v2623
  %v2664 = vpack.c.b16 %v2628, %v2626
  %v2665 = vpack.c.b16 %v2629, %v2627
  %v2666 = vpack.c.b16 %v2632, %v2630
  %v2667 = vpack.c.b16 %v2633, %v2631
  %v2668 = vpack.c.b16 %v2636, %v2634
  %v2669 = vpack.c.b16 %v2637, %v2635
  %2702 = vmatprep.subr.bf16.mxu0 %v2653
  %2703 = vmatpush1.bf16.msra.mxu0 %v2652
  %2704 = vmatprep.subr.bf16.mxu0 %v2651
  %2705 = vmatpush1.bf16.msra.mxu0 %v2650
  %2706 = vmatprep.subr.bf16.mxu0 %v2649
  %2707 = vmatpush1.bf16.msra.mxu0 %v2648
  %2708 = vmatprep.subr.bf16.mxu0 %v2647
  %2709 = vmatpush1.bf16.msra.mxu0 %v2646
  %2710 = vmatprep.subr.bf16.mxu0 %v2645
  %2711 = vmatpush1.bf16.msra.mxu0 %v2644
  %2712 = vmatprep.subr.bf16.mxu0 %v2643
  %2713 = vmatpush1.bf16.msra.mxu0 %v2642
  %2714 = vmatprep.subr.bf16.mxu0 %v2641
  %2715 = vmatpush1.bf16.msra.mxu0 %v2640
  %2716 = vmatprep.subr.bf16.mxu0 %v2639
  %2717 = vmatpush1.bf16.msra.mxu0 %v2638
  %2718 = vmatprep.subr.bf16.mxu0 %v2669
  %2719 = vmatpush2.bf16.msra.mxu0 %v2668
  %2720 = vmatprep.subr.bf16.mxu0 %v2667
  %2721 = vmatpush2.bf16.msra.mxu0 %v2666
  %2722 = vmatprep.subr.bf16.mxu0 %v2665
  %2723 = vmatpush2.bf16.msra.mxu0 %v2664
  %2724 = vmatprep.subr.bf16.mxu0 %v2663
  %2725 = vmatpush2.bf16.msra.mxu0 %v2662
  %2726 = vmatprep.subr.bf16.mxu0 %v2661
  %2727 = vmatpush2.bf16.msra.mxu0 %v2660
  %2728 = vmatprep.subr.bf16.mxu0 %v2659
  %2729 = vmatpush2.bf16.msra.mxu0 %v2658
  %2730 = vmatprep.subr.bf16.mxu0 %v2657
  %2731 = vmatpush2.bf16.msra.mxu0 %v2656
  %2732 = vmatprep.subr.bf16.mxu0 %v2655
  %2733 = vmatpush2.bf16.msra.mxu0 %v2654
  %2734 = vmatprep.mubr.bf16.mxu0 %v246
  %2735 = vmatmul.mubr.bf16.gmra.mxu0 %v245
  %v2736 = vpop.f32.mrf.mxu0
  %v2737 = vadd.f32 %v2352, %v2736
  %v2738 = vpop.f32.mrf.mxu0
  %v2739 = vadd.f32 %v2354, %v2738
  %v2740 = vpop.f32.mrf.mxu0
  %v2741 = vadd.f32 %v2358, %v2740
  %v2742 = vpop.f32.mrf.mxu0
  %v2743 = vadd.f32 %v2360, %v2742
  %2744 = vmatprep.mubr.bf16.mxu0 %v248
  %2745 = vmatmul.mubr.bf16.gmra.mxu0 %v247
  %v2746 = vpop.f32.mrf.mxu0
  %v2747 = vadd.f32 %v2364, %v2746
  %v2748 = vpop.f32.mrf.mxu0
  %v2749 = vadd.f32 %v2366, %v2748
  %v2750 = vpop.f32.mrf.mxu0
  %v2751 = vadd.f32 %v2370, %v2750
  %v2752 = vpop.f32.mrf.mxu0
  %v2753 = vadd.f32 %v2372, %v2752
  %2754 = vmatprep.mubr.bf16.mxu0 %v250
  %2755 = vmatmul.mubr.bf16.gmra.mxu0 %v249
  %v2756 = vpop.f32.mrf.mxu0
  %v2757 = vadd.f32 %v2376, %v2756
  %v2758 = vpop.f32.mrf.mxu0
  %v2759 = vadd.f32 %v2378, %v2758
  %v2760 = vpop.f32.mrf.mxu0
  %v2761 = vadd.f32 %v2382, %v2760
  %v2762 = vpop.f32.mrf.mxu0
  %v2763 = vadd.f32 %v2384, %v2762
  %2764 = vmatprep.mubr.bf16.mxu0 %v252
  %2765 = vmatmul.mubr.bf16.gmra.mxu0 %v251
  %v2766 = vpop.f32.mrf.mxu0
  %v2767 = vadd.f32 %v2388, %v2766
  %v2768 = vpop.f32.mrf.mxu0
  %v2769 = vadd.f32 %v2390, %v2768
  %v2770 = vpop.f32.mrf.mxu0
  %v2771 = vadd.f32 %v2394, %v2770
  %v2772 = vpop.f32.mrf.mxu0
  %v2773 = vadd.f32 %v2396, %v2772
  %2774 = vmatprep.mubr.bf16.mxu0 %v254
  %2775 = vmatmul.mubr.bf16.gmra.mxu0 %v253
  %v2776 = vpop.f32.mrf.mxu0
  %v2777 = vadd.f32 %v2400, %v2776
  %v2778 = vpop.f32.mrf.mxu0
  %v2779 = vadd.f32 %v2402, %v2778
  %v2780 = vpop.f32.mrf.mxu0
  %v2781 = vadd.f32 %v2406, %v2780
  %v2782 = vpop.f32.mrf.mxu0
  %v2783 = vadd.f32 %v2408, %v2782
  %2784 = vmatprep.mubr.bf16.mxu0 %v256
  %2785 = vmatmul.mubr.bf16.gmra.mxu0 %v255
  %v2786 = vpop.f32.mrf.mxu0
  %v2787 = vadd.f32 %v2412, %v2786
  %v2788 = vpop.f32.mrf.mxu0
  %v2789 = vadd.f32 %v2414, %v2788
  %v2790 = vpop.f32.mrf.mxu0
  %v2791 = vadd.f32 %v2418, %v2790
  %v2792 = vpop.f32.mrf.mxu0
  %v2793 = vadd.f32 %v2420, %v2792
  %2794 = vmatprep.mubr.bf16.mxu0 %v258
  %2795 = vmatmul.mubr.bf16.gmra.mxu0 %v257
  %v2796 = vpop.f32.mrf.mxu0
  %v2797 = vadd.f32 %v2424, %v2796
  %v2798 = vpop.f32.mrf.mxu0
  %v2799 = vadd.f32 %v2426, %v2798
  %v2800 = vpop.f32.mrf.mxu0
  %v2801 = vadd.f32 %v2430, %v2800
  %v2802 = vpop.f32.mrf.mxu0
  %v2803 = vadd.f32 %v2432, %v2802
  %2804 = vmatprep.mubr.bf16.mxu0 %v260
  %2805 = vmatmul.mubr.bf16.gmra.mxu0 %v259
  %v2806 = vpop.f32.mrf.mxu0
  %v2807 = vadd.f32 %v2436, %v2806
  %v2808 = vpop.f32.mrf.mxu0
  %v2809 = vadd.f32 %v2438, %v2808
  %v2810 = vpop.f32.mrf.mxu0
  %v2811 = vadd.f32 %v2442, %v2810
  %v2812 = vpop.f32.mrf.mxu0
  %v2813 = vadd.f32 %v2444, %v2812
  %2814 = vmatprep.mubr.bf16.mxu0 %v262
  %2815 = vmatmul.mubr.bf16.gmra.mxu0 %v261
  %v2816 = vpop.f32.mrf.mxu0
  %v2817 = vadd.f32 %v2448, %v2816
  %v2818 = vpop.f32.mrf.mxu0
  %v2819 = vadd.f32 %v2450, %v2818
  %v2820 = vpop.f32.mrf.mxu0
  %v2821 = vadd.f32 %v2454, %v2820
  %v2822 = vpop.f32.mrf.mxu0
  %v2823 = vadd.f32 %v2456, %v2822
  %2824 = vmatprep.mubr.bf16.mxu0 %v264
  %2825 = vmatmul.mubr.bf16.gmra.mxu0 %v263
  %v2826 = vpop.f32.mrf.mxu0
  %v2827 = vadd.f32 %v2460, %v2826
  %v2828 = vpop.f32.mrf.mxu0
  %v2829 = vadd.f32 %v2462, %v2828
  %v2830 = vpop.f32.mrf.mxu0
  %v2831 = vadd.f32 %v2466, %v2830
  %v2832 = vpop.f32.mrf.mxu0
  %v2833 = vadd.f32 %v2468, %v2832
  %2834 = vmatprep.mubr.bf16.mxu0 %v266
  %2835 = vmatmul.mubr.bf16.gmra.mxu0 %v265
  %v2836 = vpop.f32.mrf.mxu0
  %v2837 = vadd.f32 %v2472, %v2836
  %v2838 = vpop.f32.mrf.mxu0
  %v2839 = vadd.f32 %v2474, %v2838
  %v2840 = vpop.f32.mrf.mxu0
  %v2841 = vadd.f32 %v2478, %v2840
  %v2842 = vpop.f32.mrf.mxu0
  %v2843 = vadd.f32 %v2480, %v2842
  %2844 = vmatprep.mubr.bf16.mxu0 %v268
  %2845 = vmatmul.mubr.bf16.gmra.mxu0 %v267
  %v2846 = vpop.f32.mrf.mxu0
  %v2847 = vadd.f32 %v2484, %v2846
  %v2848 = vpop.f32.mrf.mxu0
  %v2849 = vadd.f32 %v2486, %v2848
  %v2850 = vpop.f32.mrf.mxu0
  %v2851 = vadd.f32 %v2490, %v2850
  %v2852 = vpop.f32.mrf.mxu0
  %v2853 = vadd.f32 %v2492, %v2852
  %2854 = vmatprep.mubr.bf16.mxu0 %v270
  %2855 = vmatmul.mubr.bf16.gmra.mxu0 %v269
  %v2856 = vpop.f32.mrf.mxu0
  %v2857 = vadd.f32 %v2496, %v2856
  %v2858 = vpop.f32.mrf.mxu0
  %v2859 = vadd.f32 %v2498, %v2858
  %v2860 = vpop.f32.mrf.mxu0
  %v2861 = vadd.f32 %v2502, %v2860
  %v2862 = vpop.f32.mrf.mxu0
  %v2863 = vadd.f32 %v2504, %v2862
  %2864 = vmatprep.mubr.bf16.mxu0 %v272
  %2865 = vmatmul.mubr.bf16.gmra.mxu0 %v271
  %v2866 = vpop.f32.mrf.mxu0
  %v2867 = vadd.f32 %v2508, %v2866
  %v2868 = vpop.f32.mrf.mxu0
  %v2869 = vadd.f32 %v2510, %v2868
  %v2870 = vpop.f32.mrf.mxu0
  %v2871 = vadd.f32 %v2514, %v2870
  %v2872 = vpop.f32.mrf.mxu0
  %v2873 = vadd.f32 %v2516, %v2872
  %2874 = vmatprep.mubr.bf16.mxu0 %v274
  %2875 = vmatmul.mubr.bf16.gmra.mxu0 %v273
  %v2876 = vpop.f32.mrf.mxu0
  %v2877 = vadd.f32 %v2520, %v2876
  %v2878 = vpop.f32.mrf.mxu0
  %v2879 = vadd.f32 %v2522, %v2878
  %v2880 = vpop.f32.mrf.mxu0
  %v2881 = vadd.f32 %v2526, %v2880
  %v2882 = vpop.f32.mrf.mxu0
  %v2883 = vadd.f32 %v2528, %v2882
  %2884 = vmatprep.mubr.bf16.mxu0 %v276
  %2885 = vmatmul.mubr.bf16.gmra.mxu0 %v275
  %v2886 = vpop.f32.mrf.mxu0
  %v2887 = vadd.f32 %v2532, %v2886
  %v2888 = vpop.f32.mrf.mxu0
  %v2889 = vadd.f32 %v2534, %v2888
  %v2890 = vpop.f32.mrf.mxu0
  %v2891 = vadd.f32 %v2538, %v2890
  %v2892 = vpop.f32.mrf.mxu0
  %v2893 = vadd.f32 %v2540, %v2892
  %2894 = vdwg.mxu0
  %2895 = vst [vmem:[%s5] sm:$0xff] %v2737
  %2896 = vst [vmem:[%s5 + $0x8] sm:$0xff] %v2739
  %2897 = vst [vmem:[%s5 + $0x10] sm:$0xff] %v2741
  %2898 = vst [vmem:[%s5 + $0x18] sm:$0xff] %v2743
  %2899 = vst [vmem:[%s5 + $0x20] sm:$0xff] %v2747
  %2900 = vst [vmem:[%s5 + $0x28] sm:$0xff] %v2749
  %2901 = vst [vmem:[%s5 + $0x30] sm:$0xff] %v2751
  %2902 = vst [vmem:[%s5 + $0x38] sm:$0xff] %v2753
  %2903 = vst [vmem:[%s5 + $0x40] sm:$0xff] %v2757
  %2904 = vst [vmem:[%s5 + $0x48] sm:$0xff] %v2759
  %2905 = vst [vmem:[%s5 + $0x50] sm:$0xff] %v2761
  %2906 = vst [vmem:[%s5 + $0x58] sm:$0xff] %v2763
  %2907 = vst [vmem:[%s5 + $0x60] sm:$0xff] %v2767
  %2908 = vst [vmem:[%s5 + $0x68] sm:$0xff] %v2769
  %2909 = vst [vmem:[%s5 + $0x70] sm:$0xff] %v2771
  %2910 = vst [vmem:[%s5 + $0x78] sm:$0xff] %v2773
  %2911 = vst [vmem:[%s5 + $0x80] sm:$0xff] %v2777
  %2912 = vst [vmem:[%s5 + $0x88] sm:$0xff] %v2779
  %2913 = vst [vmem:[%s5 + $0x90] sm:$0xff] %v2781
  %2914 = vst [vmem:[%s5 + $0x98] sm:$0xff] %v2783
  %2915 = vst [vmem:[%s5 + $0xa0] sm:$0xff] %v2787
  %2916 = vst [vmem:[%s5 + $0xa8] sm:$0xff] %v2789
  %2917 = vst [vmem:[%s5 + $0xb0] sm:$0xff] %v2791
  %2918 = vst [vmem:[%s5 + $0xb8] sm:$0xff] %v2793
  %2919 = vst [vmem:[%s5 + $0xc0] sm:$0xff] %v2797
  %2920 = vst [vmem:[%s5 + $0xc8] sm:$0xff] %v2799
  %2921 = vst [vmem:[%s5 + $0xd0] sm:$0xff] %v2801
  %2922 = vst [vmem:[%s5 + $0xd8] sm:$0xff] %v2803
  %2923 = vst [vmem:[%s5 + $0xe0] sm:$0xff] %v2807
  %2924 = vst [vmem:[%s5 + $0xe8] sm:$0xff] %v2809
  %2925 = vst [vmem:[%s5 + $0xf0] sm:$0xff] %v2811
  %2926 = vst [vmem:[%s5 + $0xf8] sm:$0xff] %v2813
  %2927 = vst [vmem:[%s5 + $0x100] sm:$0xff] %v2817
  %2928 = vst [vmem:[%s5 + $0x108] sm:$0xff] %v2819
  %2929 = vst [vmem:[%s5 + $0x110] sm:$0xff] %v2821
  %2930 = vst [vmem:[%s5 + $0x118] sm:$0xff] %v2823
  %2931 = vst [vmem:[%s5 + $0x120] sm:$0xff] %v2827
  %2932 = vst [vmem:[%s5 + $0x128] sm:$0xff] %v2829
  %2933 = vst [vmem:[%s5 + $0x130] sm:$0xff] %v2831
  %2934 = vst [vmem:[%s5 + $0x138] sm:$0xff] %v2833
  %2935 = vst [vmem:[%s5 + $0x140] sm:$0xff] %v2837
  %2936 = vst [vmem:[%s5 + $0x148] sm:$0xff] %v2839
  %2937 = vst [vmem:[%s5 + $0x150] sm:$0xff] %v2841
  %2938 = vst [vmem:[%s5 + $0x158] sm:$0xff] %v2843
  %2939 = vst [vmem:[%s5 + $0x160] sm:$0xff] %v2847
  %2940 = vst [vmem:[%s5 + $0x168] sm:$0xff] %v2849
  %2941 = vst [vmem:[%s5 + $0x170] sm:$0xff] %v2851
  %2942 = vst [vmem:[%s5 + $0x178] sm:$0xff] %v2853
  %2943 = vst [vmem:[%s5 + $0x180] sm:$0xff] %v2857
  %2944 = vst [vmem:[%s5 + $0x188] sm:$0xff] %v2859
  %2945 = vst [vmem:[%s5 + $0x190] sm:$0xff] %v2861
  %2946 = vst [vmem:[%s5 + $0x198] sm:$0xff] %v2863
  %2947 = vst [vmem:[%s5 + $0x1a0] sm:$0xff] %v2867
  %2948 = vst [vmem:[%s5 + $0x1a8] sm:$0xff] %v2869
  %2949 = vst [vmem:[%s5 + $0x1b0] sm:$0xff] %v2871
  %2950 = vst [vmem:[%s5 + $0x1b8] sm:$0xff] %v2873
  %2951 = vst [vmem:[%s5 + $0x1c0] sm:$0xff] %v2877
  %2952 = vst [vmem:[%s5 + $0x1c8] sm:$0xff] %v2879
  %2953 = vst [vmem:[%s5 + $0x1d0] sm:$0xff] %v2881
  %2954 = vst [vmem:[%s5 + $0x1d8] sm:$0xff] %v2883
  %2955 = vst [vmem:[%s5 + $0x1e0] sm:$0xff] %v2887
  %2956 = vst [vmem:[%s5 + $0x1e8] sm:$0xff] %v2889
  %2957 = vst [vmem:[%s5 + $0x1f0] sm:$0xff] %v2891
  %2958 = vst [vmem:[%s5 + $0x1f8] sm:$0xff] %v2893
  // Predicated region
  $region22: #{_lambda_.1} parent=0 // pred_check
    _
  $region23: #{_lambda_.1} parent=0 // pred_check_branch
    %2960 = sbr.rel (0) target = $region25
  $region24: #{_lambda_.1} parent=0 // pred_region
    _
  $region25: #{_lambda_.1} parent=0 // pred_fallthru
    _
  // Predicated region
  $region26: #{_lambda_.1} parent=0 // pred_check
    _
  $region27: #{_lambda_.1} parent=0 // pred_check_branch
    %2962 = sbr.rel (0) target = $region29
  $region28: #{_lambda_.1} parent=0 // pred_region
    _
  $region29: #{_lambda_.1} parent=0 // pred_fallthru
    _

</llo_original>
